<compile_context>
chip_gen: v6e
topology: v6e:2x2x1
jax: 0.10.0
libtpu: 0.0.40
codegen_flags: <defaults>
</compile_context>

<pallas_src>
import functools

import jax
import jax.numpy as jnp
import numpy as np
from jax import lax
from jax.experimental import pallas as pl
from jax.experimental.pallas import tpu as pltpu

_EPS = 1e-12  # matches torch.nn.functional.normalize default eps


def _routing_kernel(x_ref, z_ref, u_ref, *, m, k, dd, max_iter):
    # x_ref: (k, dd, tn)     normalized self capsules (node dim in lanes)
    # z_ref: (k, dd, m, tn)  normalized neighbor capsules (zero rows = padding)
    xn = x_ref[...].astype(jnp.float32)
    zn = z_ref[...].astype(jnp.float32)

    # iteration 0: softmax of all-zero logits is uniform 1/k, so skip the softmax.
    u = jnp.float32(1.0 / k) * jnp.sum(zn, axis=2) + xn          # (k, dd, tn)

    # remaining iterations, statically unrolled (max_iter is small & static).
    for _ in range(1, max_iter):
        # renormalize previous u over delta_d (EUP rsqrt; clamp keeps 0 -> 0)
        ssq = jnp.sum(u * u, axis=1, keepdims=True)              # (k, 1, tn)
        u = u * lax.rsqrt(jnp.maximum(ssq, jnp.float32(_EPS * _EPS)))

        # agreement logits: contract over delta_d (major axis -> plain VPU adds)
        p = jnp.sum(zn * u[:, :, None, :], axis=1)               # (k, m, tn)

        # softmax over capsules (axis 0).  u has unit norm per capsule and zn
        # rows are unit-norm or zero, so |p| <= 1 and exp cannot overflow:
        # no max-subtraction needed (keep the renormalize-before-logits order).
        e = jnp.exp(p)
        s = jnp.sum(e, axis=0, keepdims=True)                    # (1, m, tn)
        inv = pl.reciprocal(s, approx=True)                      # EUP slot
        inv = inv * (2.0 - s * inv)                              # Newton step -> ~full f32
        p = e * inv                                              # (k, m, tn)

        # weighted aggregation over neighbors + self features
        u = jnp.sum(zn * p[:, None, :, :], axis=2) + xn          # (k, dd, tn)

    # final iteration stays un-normalized, as in the torch module
    u_ref[...] = u.astype(u_ref.dtype)


def _vmem_config():
    """Per-generation (tiling budget, vmem_limit_bytes, min parallel grid steps)."""
    vmem_cap = 128 << 20
    try:
        info = pltpu.get_tpu_info()
        vmem_cap = int(getattr(info, "vmem_capacity_bytes", vmem_cap))
    except Exception:
        pass
    if vmem_cap <= (64 << 20):
        # v7x-class: 64 MiB VMEM per TC, 2 TCs share the chip -> >= 2 steps/core.
        return 18 << 20, 38 << 20, 4
    # v5e / v6e: 128 MiB parts, single TC -> spend VMEM on bigger lane tiles.
    return 48 << 20, 96 << 20, 2


def _choose_tiling(n, m, d, vmem_budget_bytes, min_steps):
    """Pick (n_pad, tile_n): node count padded to a multiple of 128 lanes and the
    largest tile that fits the VMEM budget with at least `min_steps` grid steps."""
    n_pad = -(-n // 128) * 128               # always a full lane tile (no vst.msk)
    # rough f32 bytes/node: double-buffered z block + whole-tile temporaries + x/u
    per_node = 4 * d * (6 * m + 12)
    tile = 128
    for cand in (2048, 1024, 512, 256):
        if (n_pad % cand == 0 and n_pad // cand >= min_steps
                and cand * per_node <= vmem_budget_bytes):
            tile = cand
            break
    return n_pad, tile


def routing_layer_forward(x, neighbors, max_iter, num_caps):
    """Pallas implementation of RoutingLayer.forward(x, neighbors, max_iter)."""
    n, d = x.shape
    k = num_caps
    assert d % k == 0
    dd = d // k
    assert neighbors.shape[0] % n == 0
    m = neighbors.shape[0] // n

    vmem_budget, vmem_limit, min_steps = _vmem_config()
    n_pad, tile_n = _choose_tiling(n, m, d, vmem_budget, min_steps)

    # --- JAX glue: normalize, then gather directly into node-minor layout -----
    xr = x.reshape(n, k, dd).astype(jnp.float32)
    ssq = jnp.sum(xr * xr, axis=2, keepdims=True)
    xn = xr * lax.rsqrt(jnp.maximum(ssq, jnp.float32(_EPS * _EPS)))   # (n, k, dd)

    # small source transposed once to node-minor, with a zero column at index n
    xn_t = jnp.transpose(xn, (1, 2, 0))                               # (k, dd, n)
    z_src = jnp.pad(xn_t, ((0, 0), (0, 0), (0, 1)))                   # (k, dd, n+1)
    x_t = xn_t if n_pad == n else jnp.pad(xn_t, ((0, 0), (0, 0), (0, n_pad - n)))

    # fold node padding into the index array: padded nodes point at the zero row
    idx = jnp.transpose(neighbors.reshape(n, m).astype(jnp.int32))    # (m, n)
    if n_pad > n:
        idx = jnp.pad(idx, ((0, 0), (0, n_pad - n)), constant_values=n)
    # TODO(synk): minor-axis gather lowering is XLA's choice here; if it proves
    # slow, move the gather in-kernel via scalar-prefetched indices + manual DMA.
    z_t = jnp.take(z_src, idx, axis=2)                                # (k, dd, m, n_pad)

    kern = functools.partial(_routing_kernel, m=m, k=k, dd=dd, max_iter=max_iter)

    iters = max(max_iter - 1, 0)
    flops = n_pad * (2 * m * k * dd + 2 * k * dd
                     + iters * (4 * m * k * dd + 8 * m * k + 5 * k * dd))
    transcendentals = n_pad * iters * (m * k + m + k)
    bytes_accessed = 4 * n_pad * (m * k * dd + 2 * k * dd)

    u_t = pl.pallas_call(
        kern,
        out_shape=jax.ShapeDtypeStruct((k, dd, n_pad), jnp.float32),
        grid_spec=pltpu.PrefetchScalarGridSpec(
            num_scalar_prefetch=0,
            grid=(n_pad // tile_n,),
            in_specs=[
                pl.BlockSpec((k, dd, tile_n), lambda i: (0, 0, i)),
                pl.BlockSpec((k, dd, m, tile_n), lambda i: (0, 0, 0, i)),
            ],
            out_specs=pl.BlockSpec((k, dd, tile_n), lambda i: (0, 0, i)),
        ),
        compiler_params=pltpu.CompilerParams(
            dimension_semantics=("parallel",),
            vmem_limit_bytes=int(vmem_limit),
        ),
        cost_estimate=pl.CostEstimate(
            flops=int(flops),
            transcendentals=int(transcendentals),
            bytes_accessed=int(bytes_accessed),
        ),
    )(x_t, z_t)

    u = jnp.transpose(u_t, (2, 0, 1))[:n]                             # (n, k, dd)
    return u.reshape(n, d).astype(x.dtype)


def routing_layer_ref(x, neighbors, max_iter, num_caps):
    """Pure-JAX reference mirroring the torch code exactly."""
    n, d = x.shape
    k = num_caps
    dd = d // k
    m = neighbors.shape[0] // n
    xr = x.reshape(n, k, dd)
    xn = xr / jnp.maximum(jnp.linalg.norm(xr, axis=2, keepdims=True), _EPS)
    z_src = jnp.concatenate([xn.reshape(n, d), jnp.zeros((1, d), x.dtype)], axis=0)
    z = z_src[neighbors].reshape(n, m, k, dd)
    u = None
    for it in range(max_iter):
        if u is None:
            p = jnp.zeros((n, m, k), x.dtype)
        else:
            p = jnp.sum(z * u[:, None, :, :], axis=3)
        p = jax.nn.softmax(p, axis=2)
        u = jnp.sum(z * p[..., None], axis=1) + xn
        if it < max_iter - 1:
            u = u / jnp.maximum(jnp.linalg.norm(u, axis=2, keepdims=True), _EPS)
    return u.reshape(n, d)


if __name__ == "__main__":
    # small graph: n nodes, m neighbors/node, d = k * delta_d capsule features
    n, m, d, k = 256, 8, 32, 4
    max_iter = 3

    key = jax.random.PRNGKey(0)
    kx, kn = jax.random.split(key)
    x = jax.random.normal(kx, (n, d), dtype=jnp.float32)
    # neighbor index == n means "no neighbor" (padding -> zero row), as in torch
    neighbors = jax.random.randint(kn, (n * m,), 0, n + 1, dtype=jnp.int32)

    out = jax.block_until_ready(routing_layer_forward(x, neighbors, max_iter, k))
    ref = jax.block_until_ready(routing_layer_ref(x, neighbors, max_iter, k))

    # EUP rsqrt / approx-reciprocal(+Newton) and the unsubtracted softmax differ
    # from exact math by a few ulp; 5e-5 still catches any real logic error.
    np.testing.assert_allclose(np.asarray(out), np.asarray(ref), rtol=5e-5, atol=5e-5)

    print("KERNEL_OK")
</pallas_src>

<mosaic_0001>
module attributes {stable_mosaic.version = 11 : i64} {
  func.func @_routing_kernel(%arg0: i32, %arg1: memref<4x8x128xf32, #tpu.memory_space<vmem>>, %arg2: memref<4x8x8x128xf32, #tpu.memory_space<vmem>>, %arg3: memref<4x8x128xf32, #tpu.memory_space<vmem>>) attributes {dimension_semantics = [#tpu.dimension_semantics<parallel>], iteration_bounds = array<i64: 2>, scalar_prefetch = 0 : i64, scratch_operands = 0 : i64, tpu.core_type = #tpu.core_type<tc>, window_params = [{transform_indices = @transform_0, window_bounds = array<i64: 4, 8, 128>}, {transform_indices = @transform_1, window_bounds = array<i64: 4, 8, 8, 128>}, {transform_indices = @transform_2, window_bounds = array<i64: 4, 8, 128>}]} {
    %c0 = arith.constant 0 : index
    %c0_0 = arith.constant 0 : index
    %c0_1 = arith.constant 0 : index
    %0 = vector.load %arg1[%c0, %c0_0, %c0_1] : memref<4x8x128xf32, #tpu.memory_space<vmem>>, vector<4x8x128xf32>
    %c0_2 = arith.constant 0 : index
    %c0_3 = arith.constant 0 : index
    %c0_4 = arith.constant 0 : index
    %c0_5 = arith.constant 0 : index
    %1 = vector.load %arg2[%c0_2, %c0_3, %c0_4, %c0_5] : memref<4x8x8x128xf32, #tpu.memory_space<vmem>>, vector<4x8x8x128xf32>
    %cst = arith.constant dense<0.000000e+00> : vector<4x8x128xf32>
    %2 = vector.multi_reduction <add>, %1, %cst [2] : vector<4x8x8x128xf32> to vector<4x8x128xf32>
    %cst_6 = arith.constant 2.500000e-01 : f32
    %3 = vector.broadcast %cst_6 : f32 to vector<4x8x128xf32>
    %4 = arith.mulf %3, %2 : vector<4x8x128xf32>
    %5 = arith.addf %4, %0 : vector<4x8x128xf32>
    %6 = arith.mulf %5, %5 : vector<4x8x128xf32>
    %cst_7 = arith.constant dense<0.000000e+00> : vector<4x128xf32>
    %7 = vector.multi_reduction <add>, %6, %cst_7 [1] : vector<4x8x128xf32> to vector<4x128xf32>
    %8 = vector.shape_cast %7 : vector<4x128xf32> to vector<4x1x128xf32>
    %cst_8 = arith.constant 1.000000e-24 : f32
    %9 = vector.broadcast %cst_8 : f32 to vector<4x1x128xf32>
    %10 = arith.maximumf %8, %9 : vector<4x1x128xf32>
    %11 = math.rsqrt %10 : vector<4x1x128xf32>
    %12 = vector.broadcast %11 : vector<4x1x128xf32> to vector<4x8x128xf32>
    %13 = arith.mulf %5, %12 : vector<4x8x128xf32>
    %14 = vector.shape_cast %13 : vector<4x8x128xf32> to vector<4x8x1x128xf32>
    %15 = vector.broadcast %14 : vector<4x8x1x128xf32> to vector<4x8x8x128xf32>
    %16 = arith.mulf %1, %15 : vector<4x8x8x128xf32>
    %cst_9 = arith.constant dense<0.000000e+00> : vector<4x8x128xf32>
    %17 = vector.multi_reduction <add>, %16, %cst_9 [1] : vector<4x8x8x128xf32> to vector<4x8x128xf32>
    %18 = math.exp %17 : vector<4x8x128xf32>
    %cst_10 = arith.constant dense<0.000000e+00> : vector<8x128xf32>
    %19 = vector.multi_reduction <add>, %18, %cst_10 [0] : vector<4x8x128xf32> to vector<8x128xf32>
    %20 = vector.shape_cast %19 : vector<8x128xf32> to vector<1x8x128xf32>
    %21 = tpu.reciprocal %20 {approx = true} : vector<1x8x128xf32> -> vector<1x8x128xf32>
    %22 = arith.mulf %20, %21 : vector<1x8x128xf32>
    %cst_11 = arith.constant 2.000000e+00 : f32
    %23 = vector.broadcast %cst_11 : f32 to vector<1x8x128xf32>
    %24 = arith.subf %23, %22 : vector<1x8x128xf32>
    %25 = arith.mulf %21, %24 : vector<1x8x128xf32>
    %26 = vector.broadcast %25 : vector<1x8x128xf32> to vector<4x8x128xf32>
    %27 = arith.mulf %18, %26 : vector<4x8x128xf32>
    %28 = vector.shape_cast %27 : vector<4x8x128xf32> to vector<4x1x8x128xf32>
    %29 = vector.broadcast %28 : vector<4x1x8x128xf32> to vector<4x8x8x128xf32>
    %30 = arith.mulf %1, %29 : vector<4x8x8x128xf32>
    %cst_12 = arith.constant dense<0.000000e+00> : vector<4x8x128xf32>
    %31 = vector.multi_reduction <add>, %30, %cst_12 [2] : vector<4x8x8x128xf32> to vector<4x8x128xf32>
    %32 = arith.addf %31, %0 : vector<4x8x128xf32>
    %33 = arith.mulf %32, %32 : vector<4x8x128xf32>
    %cst_13 = arith.constant dense<0.000000e+00> : vector<4x128xf32>
    %34 = vector.multi_reduction <add>, %33, %cst_13 [1] : vector<4x8x128xf32> to vector<4x128xf32>
    %35 = vector.shape_cast %34 : vector<4x128xf32> to vector<4x1x128xf32>
    %cst_14 = arith.constant 1.000000e-24 : f32
    %36 = vector.broadcast %cst_14 : f32 to vector<4x1x128xf32>
    %37 = arith.maximumf %35, %36 : vector<4x1x128xf32>
    %38 = math.rsqrt %37 : vector<4x1x128xf32>
    %39 = vector.broadcast %38 : vector<4x1x128xf32> to vector<4x8x128xf32>
    %40 = arith.mulf %32, %39 : vector<4x8x128xf32>
    %41 = vector.shape_cast %40 : vector<4x8x128xf32> to vector<4x8x1x128xf32>
    %42 = vector.broadcast %41 : vector<4x8x1x128xf32> to vector<4x8x8x128xf32>
    %43 = arith.mulf %1, %42 : vector<4x8x8x128xf32>
    %cst_15 = arith.constant dense<0.000000e+00> : vector<4x8x128xf32>
    %44 = vector.multi_reduction <add>, %43, %cst_15 [1] : vector<4x8x8x128xf32> to vector<4x8x128xf32>
    %45 = math.exp %44 : vector<4x8x128xf32>
    %cst_16 = arith.constant dense<0.000000e+00> : vector<8x128xf32>
    %46 = vector.multi_reduction <add>, %45, %cst_16 [0] : vector<4x8x128xf32> to vector<8x128xf32>
    %47 = vector.shape_cast %46 : vector<8x128xf32> to vector<1x8x128xf32>
    %48 = tpu.reciprocal %47 {approx = true} : vector<1x8x128xf32> -> vector<1x8x128xf32>
    %49 = arith.mulf %47, %48 : vector<1x8x128xf32>
    %cst_17 = arith.constant 2.000000e+00 : f32
    %50 = vector.broadcast %cst_17 : f32 to vector<1x8x128xf32>
    %51 = arith.subf %50, %49 : vector<1x8x128xf32>
    %52 = arith.mulf %48, %51 : vector<1x8x128xf32>
    %53 = vector.broadcast %52 : vector<1x8x128xf32> to vector<4x8x128xf32>
    %54 = arith.mulf %45, %53 : vector<4x8x128xf32>
    %55 = vector.shape_cast %54 : vector<4x8x128xf32> to vector<4x1x8x128xf32>
    %56 = vector.broadcast %55 : vector<4x1x8x128xf32> to vector<4x8x8x128xf32>
    %57 = arith.mulf %1, %56 : vector<4x8x8x128xf32>
    %cst_18 = arith.constant dense<0.000000e+00> : vector<4x8x128xf32>
    %58 = vector.multi_reduction <add>, %57, %cst_18 [2] : vector<4x8x8x128xf32> to vector<4x8x128xf32>
    %59 = arith.addf %58, %0 : vector<4x8x128xf32>
    %c0_19 = arith.constant 0 : index
    %c0_20 = arith.constant 0 : index
    %c0_21 = arith.constant 0 : index
    %60 = vector.load %arg3[%c0_19, %c0_20, %c0_21] : memref<4x8x128xf32, #tpu.memory_space<vmem>>, vector<4x8x128xf32>
    tpu.vector_store %arg3[%c0_19, %c0_20, %c0_21], %59 {strides = array<i32>} : memref<4x8x128xf32, #tpu.memory_space<vmem>>, vector<4x8x128xf32>,
    return
  }
  func.func @transform_0(%arg0: i32) -> (i32, i32, i32) {
    %c0_i32 = arith.constant 0 : i32
    %c0_i32_0 = arith.constant 0 : i32
    %c0_i32_1 = arith.constant 0 : i32
    return %c0_i32, %c0_i32_0, %arg0 : i32, i32, i32
  }
  func.func @transform_1(%arg0: i32) -> (i32, i32, i32, i32) {
    %c0_i32 = arith.constant 0 : i32
    %c0_i32_0 = arith.constant 0 : i32
    %c0_i32_1 = arith.constant 0 : i32
    %c0_i32_2 = arith.constant 0 : i32
    return %c0_i32, %c0_i32_0, %c0_i32_1, %arg0 : i32, i32, i32, i32
  }
  func.func @transform_2(%arg0: i32) -> (i32, i32, i32) {
    %c0_i32 = arith.constant 0 : i32
    %c0_i32_0 = arith.constant 0 : i32
    %c0_i32_1 = arith.constant 0 : i32
    return %c0_i32, %c0_i32_0, %arg0 : i32, i32, i32
  }
}

</mosaic_0001>

<llo_original>
// kernel: tpu_custom_call.1
$region0: #{tpu_custom_call.1}
  #allocation0 [shape = 'u32[]', space=smem, size = 0x4, offset = 0x4, fixed_abs, tag = 'smem constant byte address 0x4 - core index']
  #allocation1 [shape = 'u32[144,128]{1,0:T(1,128)}', space=vmem, size = 0x12000, scoped, tag = 'internal scratch']
  %s0 = inlined_call_operand.hbm [shape: f32[4,8,256], index: 0, kind: input, shape index: {}]
  %s1 = inlined_call_operand.hbm [shape: f32[4,8,8,256], index: 1, kind: input, shape index: {}]
  %s2 = inlined_call_operand.hbm [shape: f32[4,8,256], index: 2, kind: output, shape index: {}]
  %s3 = sld [smem:[#allocation0]]
  $region49: #{tpu_custom_call.1} parent=0
    _
  %s5 = ssub.s32 1, %s3
  %s6 = scalar_select 0, %s5, %s3
  $region1: #{tpu_custom_call.1} parent=0
    #allocation2 [shape = 'u8[32768]{0}', space=vmem, size = 0x8000, scoped, tag = 'input window, operand 0']
    #allocation3 [shape = 's32[2]{0}', space=sflag, size = 0x8, scoped, tag = 'scoped memory for tpu_custom_call.1']
    #allocation4 [shape = 's32[2]{0}', space=sflag, size = 0x8, scoped, tag = 'scoped memory for tpu_custom_call.1']
    #allocation5 [shape = 'u8[262144]{0}', space=vmem, size = 0x40000, scoped, tag = 'input window, operand 1']
    #allocation6 [shape = 's32[2]{0}', space=sflag, size = 0x8, scoped, tag = 'scoped memory for tpu_custom_call.1']
    #allocation7 [shape = 'u8[32768]{0}', space=vmem, size = 0x8000, scoped, tag = 'output window, operand 0']
    %7 = vsyncpa [#allocation3], 0
    %s8 = scalar_lea.sflag [#allocation3], 1
    %9 = vsyncpa %s8, 0
    %10 = vsyncpa [#allocation6], 0
    %s11 = scalar_lea.sflag [#allocation6], 1
    %12 = vsyncpa %s11, 0
    %13 = vsyncpa [#allocation4], 0
    %s14 = scalar_lea.sflag [#allocation4], 1
    %15 = vsyncpa %s14, 0
    loop: start=0, step=1, limit=4
    $region2: #{tpu_custom_call.1} parent=1 // loop_pre_header
      _
    $region3: #{tpu_custom_call.1} parent=1 // loop_header
      %s17 = sphi 0, %s21
      %p18 = scmp.ge.s32.totalorder %s17, 4
      %s27 = sphi 0, %s29
      %s30 = sphi 0, %s27
      %s31 = sphi 0, %s30
      %s47 = sphi 0, %s31
      %s53 = sphi 0, %s55
      %s56 = sphi 0, %s53
      %s57 = sphi 0, %s56
      %s73 = sphi 0, %s57
      %s79 = sphi 0, %s81
      %s82 = sphi 0, %s79
      %s83 = sphi 0, %s82
      %s99 = sphi 0, %s83
    $region4: #{tpu_custom_call.1} parent=1 // loop_header_branch
      %20 = sbr.rel (%p18) target = $region8
    $region5: #{tpu_custom_call.1} parent=1 // loop_body
      %s22 = ssub.s32 %s17, 1
      %s23 = ssub.s32 %s17, 2
      %s24 = sadd.s32 %s17, 1
      %s25 = ssub.s32 %s17, %s24
      %p26 = scmp.eq.s32.totalorder %s25, 0
      %s28 = sadd.s32 %s27, 1
      %s29 = scalar_select %p26, %s27, %s28
      %p32 = pneg %p26
      %p33 = scmp.eq.s32.totalorder %s17, 1
      %p34 = por %p32, %p33
      %p35 = scmp.ne.s32.totalorder %s27, %s30
      %p36 = scmp.eq.s32.totalorder %s17, 0
      %p37 = por %p35, %p36
      %p38 = scmp.ne.s32.totalorder %s27, %s30
      %p39 = scmp.eq.s32.totalorder %s22, 1
      %p40 = por %p38, %p39
      %p41 = scmp.ne.s32.totalorder %s30, %s31
      %p42 = scmp.eq.s32.totalorder %s22, 0
      %p43 = por %p41, %p42
      %p44 = scmp.ne.s32.totalorder %s30, %s31
      %p45 = scmp.eq.s32.totalorder %s23, 1
      %p46 = por %p44, %p45
      %p48 = scmp.ne.s32.totalorder %s31, %s47
      %p49 = scmp.eq.s32.totalorder %s23, 0
      %p50 = por %p48, %p49
      %s51 = ssub.s32 %s17, %s24
      %p52 = scmp.eq.s32.totalorder %s51, 0
      %s54 = sadd.s32 %s53, 1
      %s55 = scalar_select %p52, %s53, %s54
      %p58 = pneg %p52
      %p59 = scmp.eq.s32.totalorder %s17, 1
      %p60 = por %p58, %p59
      %p61 = scmp.ne.s32.totalorder %s53, %s56
      %p62 = scmp.eq.s32.totalorder %s17, 0
      %p63 = por %p61, %p62
      %p64 = scmp.ne.s32.totalorder %s53, %s56
      %p65 = scmp.eq.s32.totalorder %s22, 1
      %p66 = por %p64, %p65
      %p67 = scmp.ne.s32.totalorder %s56, %s57
      %p68 = scmp.eq.s32.totalorder %s22, 0
      %p69 = por %p67, %p68
      %p70 = scmp.ne.s32.totalorder %s56, %s57
      %p71 = scmp.eq.s32.totalorder %s23, 1
      %p72 = por %p70, %p71
      %p74 = scmp.ne.s32.totalorder %s57, %s73
      %p75 = scmp.eq.s32.totalorder %s23, 0
      %p76 = por %p74, %p75
      %s77 = ssub.s32 %s17, %s24
      %p78 = scmp.eq.s32.totalorder %s77, 0
      %s80 = sadd.s32 %s79, 1
      %s81 = scalar_select %p78, %s79, %s80
      %p84 = pneg %p78
      %p85 = scmp.eq.s32.totalorder %s17, 1
      %p86 = por %p84, %p85
      %p87 = scmp.ne.s32.totalorder %s79, %s82
      %p88 = scmp.eq.s32.totalorder %s17, 0
      %p89 = por %p87, %p88
      %p90 = scmp.ne.s32.totalorder %s79, %s82
      %p91 = scmp.eq.s32.totalorder %s22, 1
      %p92 = por %p90, %p91
      %p93 = scmp.ne.s32.totalorder %s82, %s83
      %p94 = scmp.eq.s32.totalorder %s22, 0
      %p95 = por %p93, %p94
      %p96 = scmp.ne.s32.totalorder %s82, %s83
      %p97 = scmp.eq.s32.totalorder %s23, 1
      %p98 = por %p96, %p97
      %p100 = scmp.ne.s32.totalorder %s83, %s99
      %p101 = scmp.eq.s32.totalorder %s23, 0
      %p102 = por %p100, %p101
      %p103 = scmp.le.s32.totalorder 1, %s17
      %p104 = scmp.lt.s32.totalorder %s17, 3
      %p105 = pnand %p103, %p104
      %p106 = pneg %p105
      // Predicated region
      $region9: #{tpu_custom_call.1} parent=5 // pred_check
        _
      $region10: #{tpu_custom_call.1} parent=5 // pred_check_branch
        %108 = sbr.rel (%p105) target = $region12
      $region11: #{tpu_custom_call.1} parent=5 // pred_region
        %s109 = ssub.s32 %s17, 1
      $region12: #{tpu_custom_call.1} parent=5 // pred_fallthru
        _
      %p110 = scmp.lt.s32.totalorder %s17, 2
      // Predicated region
      $region13: #{tpu_custom_call.1} parent=5 // pred_check
        %p111 = pneg %p110
      $region14: #{tpu_custom_call.1} parent=5 // pred_check_branch
        %113 = sbr.rel (%p111) target = $region16
      $region15: #{tpu_custom_call.1} parent=5 // pred_region
        // Predicated region
        $region17: #{tpu_custom_call.1} parent=15 // pred_check
          %p114 = pneg %p37
        $region18: #{tpu_custom_call.1} parent=15 // pred_check_branch
          %116 = sbr.rel (%p114) target = $region20
        $region19: #{tpu_custom_call.1} parent=15 // pred_region
          %s117 = sand.u32 %s27, 1
          %s118 = scalar_lea.sflag [#allocation3], %s117
          %s119 = sand.u32 %s27, 1
          %s120 = smul.addr %s119, 32
          %s121 = scalar_lea.vmem [#allocation2], %s120
          %s123 = ssub.s32 512, 512
          %124 = vsyncadd %s118, %s123
          %s125 = smul.addr %s17, 128
          %s126 = scalar_lea.hbm %s0, %s125
          %s127 = sshll.u32 %s121, 4
          %s128 = int_to_ptr.vmem [resolvable:$true] %s127
          %133 = dma.hbm_to_vmem [thread:$0]  %s126, 512, %s128, %s118, 256, 128, 8
        $region20: #{tpu_custom_call.1} parent=15 // pred_fallthru
          _
        // Predicated region
        $region21: #{tpu_custom_call.1} parent=15 // pred_check
          %p134 = pneg %p63
        $region22: #{tpu_custom_call.1} parent=15 // pred_check_branch
          %136 = sbr.rel (%p134) target = $region24
        $region23: #{tpu_custom_call.1} parent=15 // pred_region
          %s137 = sand.u32 %s53, 1
          %s138 = scalar_lea.sflag [#allocation6], %s137
          %s139 = sand.u32 %s53, 1
          %s140 = smul.addr %s139, 256
          %s141 = scalar_lea.vmem [#allocation5], %s140
          %s143 = ssub.s32 4096, 4096
          %144 = vsyncadd %s138, %s143
          %s145 = smul.addr %s17, 128
          %s146 = scalar_lea.hbm %s1, %s145
          %s147 = sshll.u32 %s141, 4
          %s148 = int_to_ptr.vmem [resolvable:$true] %s147
          %153 = dma.hbm_to_vmem [thread:$0]  %s146, 4096, %s148, %s138, 256, 128, 8
        $region24: #{tpu_custom_call.1} parent=15 // pred_fallthru
          _
      $region16: #{tpu_custom_call.1} parent=5 // pred_fallthru
        _
      %p154 = scmp.le.s32.totalorder 1, %s17
      %p155 = scmp.lt.s32.totalorder %s17, 3
      %p156 = pnand %p154, %p155
      %p157 = pneg %p156
      // Predicated region
      $region25: #{tpu_custom_call.1} parent=5 // pred_check
        _
      $region26: #{tpu_custom_call.1} parent=5 // pred_check_branch
        %159 = sbr.rel (%p156) target = $region28
      $region27: #{tpu_custom_call.1} parent=5 // pred_region
        %s160 = ssub.s32 %s17, 1
        %s161 = sand.u32 %s30, 1
        %s162 = scalar_lea.sflag [#allocation3], %s161
        %s163 = sand.u32 %s30, 1
        %s164 = smul.addr %s163, 32
        %s165 = scalar_lea.vmem [#allocation2], %s164
        // Predicated region
        $region29: #{tpu_custom_call.1} parent=27 // pred_check
          %p166 = pneg %p43
        $region30: #{tpu_custom_call.1} parent=27 // pred_check_branch
          %168 = sbr.rel (%p166) target = $region32
        $region31: #{tpu_custom_call.1} parent=27 // pred_region
          %169 = dma.done %s162, 512
        $region32: #{tpu_custom_call.1} parent=27 // pred_fallthru
          _
        %s170 = sand.u32 %s56, 1
        %s171 = scalar_lea.sflag [#allocation6], %s170
        %s172 = sand.u32 %s56, 1
        %s173 = smul.addr %s172, 256
        %s174 = scalar_lea.vmem [#allocation5], %s173
        // Predicated region
        $region33: #{tpu_custom_call.1} parent=27 // pred_check
          %p175 = pneg %p69
        $region34: #{tpu_custom_call.1} parent=27 // pred_check_branch
          %177 = sbr.rel (%p175) target = $region36
        $region35: #{tpu_custom_call.1} parent=27 // pred_region
          %178 = dma.done %s171, 4096
        $region36: #{tpu_custom_call.1} parent=27 // pred_fallthru
          _
        %s179 = sand.u32 %s30, 1
        %s180 = scalar_lea.sflag [#allocation3], %s179
        %s181 = sand.u32 %s30, 1
        %s182 = smul.addr %s181, 32
        %s183 = scalar_lea.vmem [#allocation2], %s182
        %p184 = pneg %p43
        %p185 = pneg %p40
        %s186 = sand.u32 %s56, 1
        %s187 = scalar_lea.sflag [#allocation6], %s186
        %s188 = sand.u32 %s56, 1
        %s189 = smul.addr %s188, 256
        %s190 = scalar_lea.vmem [#allocation5], %s189
        %p191 = pneg %p69
        %p192 = pneg %p66
        %p193 = pneg %p95
        %p194 = pneg %p92
        %s195 = sand.u32 %s82, 1
        %s196 = scalar_lea.sflag [#allocation4], %s195
        %s197 = sand.u32 %s82, 1
        %s198 = smul.addr %s197, 32
        %s199 = scalar_lea.vmem [#allocation7], %s198
        %v200 = vld [vmem:[%s165] sm:$0xff]
        %v201 = vld [vmem:[%s165 + $0x8] sm:$0xff]
        %v202 = vld [vmem:[%s165 + $0x10] sm:$0xff]
        %v203 = vld [vmem:[%s165 + $0x18] sm:$0xff]
        %v204 = vld [vmem:[%s174] sm:$0xff]
        %v205 = vld [vmem:[%s174 + $0x8] sm:$0xff]
        %v206 = vld [vmem:[%s174 + $0x10] sm:$0xff]
        %v207 = vld [vmem:[%s174 + $0x18] sm:$0xff]
        %v208 = vld [vmem:[%s174 + $0x20] sm:$0xff]
        %v209 = vld [vmem:[%s174 + $0x28] sm:$0xff]
        %v210 = vld [vmem:[%s174 + $0x30] sm:$0xff]
        %v211 = vld [vmem:[%s174 + $0x38] sm:$0xff]
        %v212 = vld [vmem:[%s174 + $0x40] sm:$0xff]
        %v213 = vld [vmem:[%s174 + $0x48] sm:$0xff]
        %v214 = vld [vmem:[%s174 + $0x50] sm:$0xff]
        %v215 = vld [vmem:[%s174 + $0x58] sm:$0xff]
        %v216 = vld [vmem:[%s174 + $0x60] sm:$0xff]
        %v217 = vld [vmem:[%s174 + $0x68] sm:$0xff]
        %v218 = vld [vmem:[%s174 + $0x70] sm:$0xff]
        %v219 = vld [vmem:[%s174 + $0x78] sm:$0xff]
        %v220 = vld [vmem:[%s174 + $0x80] sm:$0xff]
        %v221 = vld [vmem:[%s174 + $0x88] sm:$0xff]
        %v222 = vld [vmem:[%s174 + $0x90] sm:$0xff]
        %v223 = vld [vmem:[%s174 + $0x98] sm:$0xff]
        %v224 = vld [vmem:[%s174 + $0xa0] sm:$0xff]
        %v225 = vld [vmem:[%s174 + $0xa8] sm:$0xff]
        %v226 = vld [vmem:[%s174 + $0xb0] sm:$0xff]
        %v227 = vld [vmem:[%s174 + $0xb8] sm:$0xff]
        %v228 = vld [vmem:[%s174 + $0xc0] sm:$0xff]
        %v229 = vld [vmem:[%s174 + $0xc8] sm:$0xff]
        %v230 = vld [vmem:[%s174 + $0xd0] sm:$0xff]
        %v231 = vld [vmem:[%s174 + $0xd8] sm:$0xff]
        %v232 = vld [vmem:[%s174 + $0xe0] sm:$0xff]
        %v233 = vld [vmem:[%s174 + $0xe8] sm:$0xff]
        %v234 = vld [vmem:[%s174 + $0xf0] sm:$0xff]
        %v235 = vld [vmem:[%s174 + $0xf8] sm:$0xff]
        %v236 = vrot.slane %v204, 4
        %v237 = vadd.f32 %v204, %v236
        %v238 = vrot.slane %v237, 2
        %v239 = vadd.f32 %v237, %v238
        %v240 = vrot.slane %v239, 1
        %v241 = vadd.f32 %v239, %v240
        %v242 = vrot.slane %v205, 4
        %v243 = vadd.f32 %v205, %v242
        %v244 = vrot.slane %v243, 2
        %v245 = vadd.f32 %v243, %v244
        %v246 = vrot.slane %v245, 1
        %v247 = vadd.f32 %v245, %v246
        %v248 = vrot.slane %v206, 4
        %v249 = vadd.f32 %v206, %v248
        %v250 = vrot.slane %v249, 2
        %v251 = vadd.f32 %v249, %v250
        %v252 = vrot.slane %v251, 1
        %v253 = vadd.f32 %v251, %v252
        %v254 = vrot.slane %v207, 4
        %v255 = vadd.f32 %v207, %v254
        %v256 = vrot.slane %v255, 2
        %v257 = vadd.f32 %v255, %v256
        %v258 = vrot.slane %v257, 1
        %v259 = vadd.f32 %v257, %v258
        %v260 = vrot.slane %v208, 4
        %v261 = vadd.f32 %v208, %v260
        %v262 = vrot.slane %v261, 2
        %v263 = vadd.f32 %v261, %v262
        %v264 = vrot.slane %v263, 1
        %v265 = vadd.f32 %v263, %v264
        %v266 = vrot.slane %v209, 4
        %v267 = vadd.f32 %v209, %v266
        %v268 = vrot.slane %v267, 2
        %v269 = vadd.f32 %v267, %v268
        %v270 = vrot.slane %v269, 1
        %v271 = vadd.f32 %v269, %v270
        %v272 = vrot.slane %v210, 4
        %v273 = vadd.f32 %v210, %v272
        %v274 = vrot.slane %v273, 2
        %v275 = vadd.f32 %v273, %v274
        %v276 = vrot.slane %v275, 1
        %v277 = vadd.f32 %v275, %v276
        %v278 = vrot.slane %v211, 4
        %v279 = vadd.f32 %v211, %v278
        %v280 = vrot.slane %v279, 2
        %v281 = vadd.f32 %v279, %v280
        %v282 = vrot.slane %v281, 1
        %v283 = vadd.f32 %v281, %v282
        %v284 = vrot.slane %v212, 4
        %v285 = vadd.f32 %v212, %v284
        %v286 = vrot.slane %v285, 2
        %v287 = vadd.f32 %v285, %v286
        %v288 = vrot.slane %v287, 1
        %v289 = vadd.f32 %v287, %v288
        %v290 = vrot.slane %v213, 4
        %v291 = vadd.f32 %v213, %v290
        %v292 = vrot.slane %v291, 2
        %v293 = vadd.f32 %v291, %v292
        %v294 = vrot.slane %v293, 1
        %v295 = vadd.f32 %v293, %v294
        %v296 = vrot.slane %v214, 4
        %v297 = vadd.f32 %v214, %v296
        %v298 = vrot.slane %v297, 2
        %v299 = vadd.f32 %v297, %v298
        %v300 = vrot.slane %v299, 1
        %v301 = vadd.f32 %v299, %v300
        %v302 = vrot.slane %v215, 4
        %v303 = vadd.f32 %v215, %v302
        %v304 = vrot.slane %v303, 2
        %v305 = vadd.f32 %v303, %v304
        %v306 = vrot.slane %v305, 1
        %v307 = vadd.f32 %v305, %v306
        %v308 = vrot.slane %v216, 4
        %v309 = vadd.f32 %v216, %v308
        %v310 = vrot.slane %v309, 2
        %v311 = vadd.f32 %v309, %v310
        %v312 = vrot.slane %v311, 1
        %v313 = vadd.f32 %v311, %v312
        %v314 = vrot.slane %v217, 4
        %v315 = vadd.f32 %v217, %v314
        %v316 = vrot.slane %v315, 2
        %v317 = vadd.f32 %v315, %v316
        %v318 = vrot.slane %v317, 1
        %v319 = vadd.f32 %v317, %v318
        %v320 = vrot.slane %v218, 4
        %v321 = vadd.f32 %v218, %v320
        %v322 = vrot.slane %v321, 2
        %v323 = vadd.f32 %v321, %v322
        %v324 = vrot.slane %v323, 1
        %v325 = vadd.f32 %v323, %v324
        %v326 = vrot.slane %v219, 4
        %v327 = vadd.f32 %v219, %v326
        %v328 = vrot.slane %v327, 2
        %v329 = vadd.f32 %v327, %v328
        %v330 = vrot.slane %v329, 1
        %v331 = vadd.f32 %v329, %v330
        %v332 = vrot.slane %v220, 4
        %v333 = vadd.f32 %v220, %v332
        %v334 = vrot.slane %v333, 2
        %v335 = vadd.f32 %v333, %v334
        %v336 = vrot.slane %v335, 1
        %v337 = vadd.f32 %v335, %v336
        %v338 = vrot.slane %v221, 4
        %v339 = vadd.f32 %v221, %v338
        %v340 = vrot.slane %v339, 2
        %v341 = vadd.f32 %v339, %v340
        %v342 = vrot.slane %v341, 1
        %v343 = vadd.f32 %v341, %v342
        %v344 = vrot.slane %v222, 4
        %v345 = vadd.f32 %v222, %v344
        %v346 = vrot.slane %v345, 2
        %v347 = vadd.f32 %v345, %v346
        %v348 = vrot.slane %v347, 1
        %v349 = vadd.f32 %v347, %v348
        %v350 = vrot.slane %v223, 4
        %v351 = vadd.f32 %v223, %v350
        %v352 = vrot.slane %v351, 2
        %v353 = vadd.f32 %v351, %v352
        %v354 = vrot.slane %v353, 1
        %v355 = vadd.f32 %v353, %v354
        %v356 = vrot.slane %v224, 4
        %v357 = vadd.f32 %v224, %v356
        %v358 = vrot.slane %v357, 2
        %v359 = vadd.f32 %v357, %v358
        %v360 = vrot.slane %v359, 1
        %v361 = vadd.f32 %v359, %v360
        %v362 = vrot.slane %v225, 4
        %v363 = vadd.f32 %v225, %v362
        %v364 = vrot.slane %v363, 2
        %v365 = vadd.f32 %v363, %v364
        %v366 = vrot.slane %v365, 1
        %v367 = vadd.f32 %v365, %v366
        %v368 = vrot.slane %v226, 4
        %v369 = vadd.f32 %v226, %v368
        %v370 = vrot.slane %v369, 2
        %v371 = vadd.f32 %v369, %v370
        %v372 = vrot.slane %v371, 1
        %v373 = vadd.f32 %v371, %v372
        %v374 = vrot.slane %v227, 4
        %v375 = vadd.f32 %v227, %v374
        %v376 = vrot.slane %v375, 2
        %v377 = vadd.f32 %v375, %v376
        %v378 = vrot.slane %v377, 1
        %v379 = vadd.f32 %v377, %v378
        %v380 = vrot.slane %v228, 4
        %v381 = vadd.f32 %v228, %v380
        %v382 = vrot.slane %v381, 2
        %v383 = vadd.f32 %v381, %v382
        %v384 = vrot.slane %v383, 1
        %v385 = vadd.f32 %v383, %v384
        %v386 = vrot.slane %v229, 4
        %v387 = vadd.f32 %v229, %v386
        %v388 = vrot.slane %v387, 2
        %v389 = vadd.f32 %v387, %v388
        %v390 = vrot.slane %v389, 1
        %v391 = vadd.f32 %v389, %v390
        %v392 = vrot.slane %v230, 4
        %v393 = vadd.f32 %v230, %v392
        %v394 = vrot.slane %v393, 2
        %v395 = vadd.f32 %v393, %v394
        %v396 = vrot.slane %v395, 1
        %v397 = vadd.f32 %v395, %v396
        %v398 = vrot.slane %v231, 4
        %v399 = vadd.f32 %v231, %v398
        %v400 = vrot.slane %v399, 2
        %v401 = vadd.f32 %v399, %v400
        %v402 = vrot.slane %v401, 1
        %v403 = vadd.f32 %v401, %v402
        %v404 = vrot.slane %v232, 4
        %v405 = vadd.f32 %v232, %v404
        %v406 = vrot.slane %v405, 2
        %v407 = vadd.f32 %v405, %v406
        %v408 = vrot.slane %v407, 1
        %v409 = vadd.f32 %v407, %v408
        %v410 = vrot.slane %v233, 4
        %v411 = vadd.f32 %v233, %v410
        %v412 = vrot.slane %v411, 2
        %v413 = vadd.f32 %v411, %v412
        %v414 = vrot.slane %v413, 1
        %v415 = vadd.f32 %v413, %v414
        %v416 = vrot.slane %v234, 4
        %v417 = vadd.f32 %v234, %v416
        %v418 = vrot.slane %v417, 2
        %v419 = vadd.f32 %v417, %v418
        %v420 = vrot.slane %v419, 1
        %v421 = vadd.f32 %v419, %v420
        %v422 = vrot.slane %v235, 4
        %v423 = vadd.f32 %v235, %v422
        %v424 = vrot.slane %v423, 2
        %v425 = vadd.f32 %v423, %v424
        %v426 = vrot.slane %v425, 1
        %v427 = vadd.f32 %v425, %v426
        %v428 = vmul.f32 %v241, 0.25
        %v429 = vmul.f32 %v247, 0.25
        %v430 = vmul.f32 %v253, 0.25
        %v431 = vmul.f32 %v259, 0.25
        %v432 = vmul.f32 %v265, 0.25
        %v433 = vmul.f32 %v271, 0.25
        %v434 = vmul.f32 %v277, 0.25
        %v435 = vmul.f32 %v283, 0.25
        %v436 = vmul.f32 %v289, 0.25
        %v437 = vmul.f32 %v295, 0.25
        %v438 = vmul.f32 %v301, 0.25
        %v439 = vmul.f32 %v307, 0.25
        %v440 = vmul.f32 %v313, 0.25
        %v441 = vmul.f32 %v319, 0.25
        %v442 = vmul.f32 %v325, 0.25
        %v443 = vmul.f32 %v331, 0.25
        %v444 = vmul.f32 %v337, 0.25
        %v445 = vmul.f32 %v343, 0.25
        %v446 = vmul.f32 %v349, 0.25
        %v447 = vmul.f32 %v355, 0.25
        %v448 = vmul.f32 %v361, 0.25
        %v449 = vmul.f32 %v367, 0.25
        %v450 = vmul.f32 %v373, 0.25
        %v451 = vmul.f32 %v379, 0.25
        %v452 = vmul.f32 %v385, 0.25
        %v453 = vmul.f32 %v391, 0.25
        %v454 = vmul.f32 %v397, 0.25
        %v455 = vmul.f32 %v403, 0.25
        %v456 = vmul.f32 %v409, 0.25
        %v457 = vmul.f32 %v415, 0.25
        %v458 = vmul.f32 %v421, 0.25
        %v459 = vmul.f32 %v427, 0.25
        %v464 = vrot.slane %v200, 1
        %v465 = vrot.slane %v200, 2
        %v466 = vrot.slane %v200, 3
        %v467 = vrot.slane %v200, 4
        %v468 = vrot.slane %v200, 5
        %v469 = vrot.slane %v200, 6
        %v470 = vrot.slane %v200, 7
        %v471 = vrot.slane %v201, 1
        %v472 = vrot.slane %v201, 2
        %v473 = vrot.slane %v201, 3
        %v474 = vrot.slane %v201, 4
        %v475 = vrot.slane %v201, 5
        %v476 = vrot.slane %v201, 6
        %v477 = vrot.slane %v201, 7
        %v478 = vrot.slane %v202, 1
        %v479 = vrot.slane %v202, 2
        %v480 = vrot.slane %v202, 3
        %v481 = vrot.slane %v202, 4
        %v482 = vrot.slane %v202, 5
        %v483 = vrot.slane %v202, 6
        %v484 = vrot.slane %v202, 7
        %v485 = vrot.slane %v203, 1
        %v486 = vrot.slane %v203, 2
        %v487 = vrot.slane %v203, 3
        %v488 = vrot.slane %v203, 4
        %v489 = vrot.slane %v203, 5
        %v490 = vrot.slane %v203, 6
        %v491 = vrot.slane %v203, 7
        %v524 = vadd.f32 %v428, %v200
        %v525 = vadd.f32 %v429, %v464
        %v526 = vadd.f32 %v430, %v465
        %v527 = vadd.f32 %v431, %v466
        %v528 = vadd.f32 %v432, %v467
        %v529 = vadd.f32 %v433, %v468
        %v530 = vadd.f32 %v434, %v469
        %v531 = vadd.f32 %v435, %v470
        %v532 = vadd.f32 %v436, %v201
        %v533 = vadd.f32 %v437, %v471
        %v534 = vadd.f32 %v438, %v472
        %v535 = vadd.f32 %v439, %v473
        %v536 = vadd.f32 %v440, %v474
        %v537 = vadd.f32 %v441, %v475
        %v538 = vadd.f32 %v442, %v476
        %v539 = vadd.f32 %v443, %v477
        %v540 = vadd.f32 %v444, %v202
        %v541 = vadd.f32 %v445, %v478
        %v542 = vadd.f32 %v446, %v479
        %v543 = vadd.f32 %v447, %v480
        %v544 = vadd.f32 %v448, %v481
        %v545 = vadd.f32 %v449, %v482
        %v546 = vadd.f32 %v450, %v483
        %v547 = vadd.f32 %v451, %v484
        %v548 = vadd.f32 %v452, %v203
        %v549 = vadd.f32 %v453, %v485
        %v550 = vadd.f32 %v454, %v486
        %v551 = vadd.f32 %v455, %v487
        %v552 = vadd.f32 %v456, %v488
        %v553 = vadd.f32 %v457, %v489
        %v554 = vadd.f32 %v458, %v490
        %v555 = vadd.f32 %v459, %v491
        %v556 = vmul.f32 %v524, %v524
        %v557 = vmul.f32 %v525, %v525
        %v558 = vmul.f32 %v526, %v526
        %v559 = vmul.f32 %v527, %v527
        %v560 = vmul.f32 %v528, %v528
        %v561 = vmul.f32 %v529, %v529
        %v562 = vmul.f32 %v530, %v530
        %v563 = vmul.f32 %v531, %v531
        %v564 = vmul.f32 %v532, %v532
        %v565 = vmul.f32 %v533, %v533
        %v566 = vmul.f32 %v534, %v534
        %v567 = vmul.f32 %v535, %v535
        %v568 = vmul.f32 %v536, %v536
        %v569 = vmul.f32 %v537, %v537
        %v570 = vmul.f32 %v538, %v538
        %v571 = vmul.f32 %v539, %v539
        %v572 = vmul.f32 %v540, %v540
        %v573 = vmul.f32 %v541, %v541
        %v574 = vmul.f32 %v542, %v542
        %v575 = vmul.f32 %v543, %v543
        %v576 = vmul.f32 %v544, %v544
        %v577 = vmul.f32 %v545, %v545
        %v578 = vmul.f32 %v546, %v546
        %v579 = vmul.f32 %v547, %v547
        %v580 = vmul.f32 %v548, %v548
        %v581 = vmul.f32 %v549, %v549
        %v582 = vmul.f32 %v550, %v550
        %v583 = vmul.f32 %v551, %v551
        %v584 = vmul.f32 %v552, %v552
        %v585 = vmul.f32 %v553, %v553
        %v586 = vmul.f32 %v554, %v554
        %v587 = vmul.f32 %v555, %v555
        %v620 = vrot.slane %v557, 7
        %vm621 = vcmask 1041409
        %v622 = vsel %vm621, %v620, %v556
        %v623 = vrot.slane %v558, 6
        %vm624 = vcmask 1042434
        %v625 = vsel %vm624, %v623, %v622
        %v626 = vrot.slane %v559, 5
        %vm627 = vcmask 1043459
        %v628 = vsel %vm627, %v626, %v625
        %v629 = vrot.slane %v560, 4
        %vm630 = vcmask 1044484
        %v631 = vsel %vm630, %v629, %v628
        %v632 = vrot.slane %v561, 3
        %vm633 = vcmask 1045509
        %v634 = vsel %vm633, %v632, %v631
        %v635 = vrot.slane %v562, 2
        %vm636 = vcmask 1046534
        %v637 = vsel %vm636, %v635, %v634
        %v638 = vrot.slane %v563, 1
        %vm639 = vcmask 1047559
        %v640 = vsel %vm639, %v638, %v637
        %v641 = vrot.slane %v565, 7
        %v642 = vsel %vm621, %v641, %v564
        %v643 = vrot.slane %v566, 6
        %v644 = vsel %vm624, %v643, %v642
        %v645 = vrot.slane %v567, 5
        %v646 = vsel %vm627, %v645, %v644
        %v647 = vrot.slane %v568, 4
        %v648 = vsel %vm630, %v647, %v646
        %v649 = vrot.slane %v569, 3
        %v650 = vsel %vm633, %v649, %v648
        %v651 = vrot.slane %v570, 2
        %v652 = vsel %vm636, %v651, %v650
        %v653 = vrot.slane %v571, 1
        %v654 = vsel %vm639, %v653, %v652
        %v655 = vrot.slane %v573, 7
        %v656 = vsel %vm621, %v655, %v572
        %v657 = vrot.slane %v574, 6
        %v658 = vsel %vm624, %v657, %v656
        %v659 = vrot.slane %v575, 5
        %v660 = vsel %vm627, %v659, %v658
        %v661 = vrot.slane %v576, 4
        %v662 = vsel %vm630, %v661, %v660
        %v663 = vrot.slane %v577, 3
        %v664 = vsel %vm633, %v663, %v662
        %v665 = vrot.slane %v578, 2
        %v666 = vsel %vm636, %v665, %v664
        %v667 = vrot.slane %v579, 1
        %v668 = vsel %vm639, %v667, %v666
        %v669 = vrot.slane %v581, 7
        %v670 = vsel %vm621, %v669, %v580
        %v671 = vrot.slane %v582, 6
        %v672 = vsel %vm624, %v671, %v670
        %v673 = vrot.slane %v583, 5
        %v674 = vsel %vm627, %v673, %v672
        %v675 = vrot.slane %v584, 4
        %v676 = vsel %vm630, %v675, %v674
        %v677 = vrot.slane %v585, 3
        %v678 = vsel %vm633, %v677, %v676
        %v679 = vrot.slane %v586, 2
        %v680 = vsel %vm636, %v679, %v678
        %v681 = vrot.slane %v587, 1
        %v682 = vsel %vm639, %v681, %v680
        %v687 = vrot.slane %v640, 4
        %v688 = vadd.f32 %v640, %v687
        %v689 = vrot.slane %v688, 2
        %v690 = vadd.f32 %v688, %v689
        %v691 = vrot.slane %v690, 1
        %v692 = vadd.f32 %v690, %v691
        %v693 = vrot.slane %v654, 4
        %v694 = vadd.f32 %v654, %v693
        %v695 = vrot.slane %v694, 2
        %v696 = vadd.f32 %v694, %v695
        %v697 = vrot.slane %v696, 1
        %v698 = vadd.f32 %v696, %v697
        %v699 = vrot.slane %v668, 4
        %v700 = vadd.f32 %v668, %v699
        %v701 = vrot.slane %v700, 2
        %v702 = vadd.f32 %v700, %v701
        %v703 = vrot.slane %v702, 1
        %v704 = vadd.f32 %v702, %v703
        %v705 = vrot.slane %v682, 4
        %v706 = vadd.f32 %v682, %v705
        %v707 = vrot.slane %v706, 2
        %v708 = vadd.f32 %v706, %v707
        %v709 = vrot.slane %v708, 1
        %v710 = vadd.f32 %v708, %v709
        %v711 = vmax.f32 %v692, 1e-24
        %v712 = vmax.f32 %v698, 1e-24
        %v713 = vmax.f32 %v704, 1e-24
        %v714 = vmax.f32 %v710, 1e-24
        %v715 = vrsqrt.pop %v711
        %v716 = vrsqrt.pop %v712
        %v717 = vrsqrt.pop %v713
        %v718 = vrsqrt.pop %v714
        %v719 = vlaneseq
        %v720 = vshrl.u32 %v719, 7
        %v721 = vsub.s32 0, %v720
        %v722 = vrot.slane %v715, %v721
        %v723 = vlaneseq
        %v724 = vshrl.u32 %v723, 7
        %v725 = vsub.s32 0, %v724
        %v726 = vrot.slane %v716, %v725
        %v727 = vlaneseq
        %v728 = vshrl.u32 %v727, 7
        %v729 = vsub.s32 0, %v728
        %v730 = vrot.slane %v717, %v729
        %v731 = vlaneseq
        %v732 = vshrl.u32 %v731, 7
        %v733 = vsub.s32 0, %v732
        %v734 = vrot.slane %v718, %v733
        %v735 = vmul.f32 %v524, %v722
        %v736 = vmul.f32 %v525, %v722
        %v737 = vmul.f32 %v526, %v722
        %v738 = vmul.f32 %v527, %v722
        %v739 = vmul.f32 %v528, %v722
        %v740 = vmul.f32 %v529, %v722
        %v741 = vmul.f32 %v530, %v722
        %v742 = vmul.f32 %v531, %v722
        %v743 = vmul.f32 %v532, %v726
        %v744 = vmul.f32 %v533, %v726
        %v745 = vmul.f32 %v534, %v726
        %v746 = vmul.f32 %v535, %v726
        %v747 = vmul.f32 %v536, %v726
        %v748 = vmul.f32 %v537, %v726
        %v749 = vmul.f32 %v538, %v726
        %v750 = vmul.f32 %v539, %v726
        %v751 = vmul.f32 %v540, %v730
        %v752 = vmul.f32 %v541, %v730
        %v753 = vmul.f32 %v542, %v730
        %v754 = vmul.f32 %v543, %v730
        %v755 = vmul.f32 %v544, %v730
        %v756 = vmul.f32 %v545, %v730
        %v757 = vmul.f32 %v546, %v730
        %v758 = vmul.f32 %v547, %v730
        %v759 = vmul.f32 %v548, %v734
        %v760 = vmul.f32 %v549, %v734
        %v761 = vmul.f32 %v550, %v734
        %v762 = vmul.f32 %v551, %v734
        %v763 = vmul.f32 %v552, %v734
        %v764 = vmul.f32 %v553, %v734
        %v765 = vmul.f32 %v554, %v734
        %v766 = vmul.f32 %v555, %v734
        %v767 = vlaneseq
        %v768 = vshrl.u32 %v767, 7
        %v769 = vsub.s32 0, %v768
        %v770 = vrot.slane %v735, %v769
        %v771 = vlaneseq
        %v772 = vshrl.u32 %v771, 7
        %v773 = vsub.s32 0, %v772
        %v774 = vrot.slane %v736, %v773
        %v775 = vlaneseq
        %v776 = vshrl.u32 %v775, 7
        %v777 = vsub.s32 0, %v776
        %v778 = vrot.slane %v737, %v777
        %v779 = vlaneseq
        %v780 = vshrl.u32 %v779, 7
        %v781 = vsub.s32 0, %v780
        %v782 = vrot.slane %v738, %v781
        %v783 = vlaneseq
        %v784 = vshrl.u32 %v783, 7
        %v785 = vsub.s32 0, %v784
        %v786 = vrot.slane %v739, %v785
        %v787 = vlaneseq
        %v788 = vshrl.u32 %v787, 7
        %v789 = vsub.s32 0, %v788
        %v790 = vrot.slane %v740, %v789
        %v791 = vlaneseq
        %v792 = vshrl.u32 %v791, 7
        %v793 = vsub.s32 0, %v792
        %v794 = vrot.slane %v741, %v793
        %v795 = vlaneseq
        %v796 = vshrl.u32 %v795, 7
        %v797 = vsub.s32 0, %v796
        %v798 = vrot.slane %v742, %v797
        %v799 = vlaneseq
        %v800 = vshrl.u32 %v799, 7
        %v801 = vsub.s32 0, %v800
        %v802 = vrot.slane %v743, %v801
        %v803 = vlaneseq
        %v804 = vshrl.u32 %v803, 7
        %v805 = vsub.s32 0, %v804
        %v806 = vrot.slane %v744, %v805
        %v807 = vlaneseq
        %v808 = vshrl.u32 %v807, 7
        %v809 = vsub.s32 0, %v808
        %v810 = vrot.slane %v745, %v809
        %v811 = vlaneseq
        %v812 = vshrl.u32 %v811, 7
        %v813 = vsub.s32 0, %v812
        %v814 = vrot.slane %v746, %v813
        %v815 = vlaneseq
        %v816 = vshrl.u32 %v815, 7
        %v817 = vsub.s32 0, %v816
        %v818 = vrot.slane %v747, %v817
        %v819 = vlaneseq
        %v820 = vshrl.u32 %v819, 7
        %v821 = vsub.s32 0, %v820
        %v822 = vrot.slane %v748, %v821
        %v823 = vlaneseq
        %v824 = vshrl.u32 %v823, 7
        %v825 = vsub.s32 0, %v824
        %v826 = vrot.slane %v749, %v825
        %v827 = vlaneseq
        %v828 = vshrl.u32 %v827, 7
        %v829 = vsub.s32 0, %v828
        %v830 = vrot.slane %v750, %v829
        %v831 = vlaneseq
        %v832 = vshrl.u32 %v831, 7
        %v833 = vsub.s32 0, %v832
        %v834 = vrot.slane %v751, %v833
        %v835 = vlaneseq
        %v836 = vshrl.u32 %v835, 7
        %v837 = vsub.s32 0, %v836
        %v838 = vrot.slane %v752, %v837
        %v839 = vlaneseq
        %v840 = vshrl.u32 %v839, 7
        %v841 = vsub.s32 0, %v840
        %v842 = vrot.slane %v753, %v841
        %v843 = vlaneseq
        %v844 = vshrl.u32 %v843, 7
        %v845 = vsub.s32 0, %v844
        %v846 = vrot.slane %v754, %v845
        %v847 = vlaneseq
        %v848 = vshrl.u32 %v847, 7
        %v849 = vsub.s32 0, %v848
        %v850 = vrot.slane %v755, %v849
        %v851 = vlaneseq
        %v852 = vshrl.u32 %v851, 7
        %v853 = vsub.s32 0, %v852
        %v854 = vrot.slane %v756, %v853
        %v855 = vlaneseq
        %v856 = vshrl.u32 %v855, 7
        %v857 = vsub.s32 0, %v856
        %v858 = vrot.slane %v757, %v857
        %v859 = vlaneseq
        %v860 = vshrl.u32 %v859, 7
        %v861 = vsub.s32 0, %v860
        %v862 = vrot.slane %v758, %v861
        %v863 = vlaneseq
        %v864 = vshrl.u32 %v863, 7
        %v865 = vsub.s32 0, %v864
        %v866 = vrot.slane %v759, %v865
        %v867 = vlaneseq
        %v868 = vshrl.u32 %v867, 7
        %v869 = vsub.s32 0, %v868
        %v870 = vrot.slane %v760, %v869
        %v871 = vlaneseq
        %v872 = vshrl.u32 %v871, 7
        %v873 = vsub.s32 0, %v872
        %v874 = vrot.slane %v761, %v873
        %v875 = vlaneseq
        %v876 = vshrl.u32 %v875, 7
        %v877 = vsub.s32 0, %v876
        %v878 = vrot.slane %v762, %v877
        %v879 = vlaneseq
        %v880 = vshrl.u32 %v879, 7
        %v881 = vsub.s32 0, %v880
        %v882 = vrot.slane %v763, %v881
        %v883 = vlaneseq
        %v884 = vshrl.u32 %v883, 7
        %v885 = vsub.s32 0, %v884
        %v886 = vrot.slane %v764, %v885
        %v887 = vlaneseq
        %v888 = vshrl.u32 %v887, 7
        %v889 = vsub.s32 0, %v888
        %v890 = vrot.slane %v765, %v889
        %v891 = vlaneseq
        %v892 = vshrl.u32 %v891, 7
        %v893 = vsub.s32 0, %v892
        %v894 = vrot.slane %v766, %v893
        %v895 = vmul.f32 %v204, %v770
        %v896 = vmul.f32 %v205, %v774
        %v897 = vmul.f32 %v206, %v778
        %v898 = vmul.f32 %v207, %v782
        %v899 = vmul.f32 %v208, %v786
        %v900 = vmul.f32 %v209, %v790
        %v901 = vmul.f32 %v210, %v794
        %v902 = vmul.f32 %v211, %v798
        %v903 = vmul.f32 %v212, %v802
        %v904 = vmul.f32 %v213, %v806
        %v905 = vmul.f32 %v214, %v810
        %v906 = vmul.f32 %v215, %v814
        %v907 = vmul.f32 %v216, %v818
        %v908 = vmul.f32 %v217, %v822
        %v909 = vmul.f32 %v218, %v826
        %v910 = vmul.f32 %v219, %v830
        %v911 = vmul.f32 %v220, %v834
        %v912 = vmul.f32 %v221, %v838
        %v913 = vmul.f32 %v222, %v842
        %v914 = vmul.f32 %v223, %v846
        %v915 = vmul.f32 %v224, %v850
        %v916 = vmul.f32 %v225, %v854
        %v917 = vmul.f32 %v226, %v858
        %v918 = vmul.f32 %v227, %v862
        %v919 = vmul.f32 %v228, %v866
        %v920 = vmul.f32 %v229, %v870
        %v921 = vmul.f32 %v230, %v874
        %v922 = vmul.f32 %v231, %v878
        %v923 = vmul.f32 %v232, %v882
        %v924 = vmul.f32 %v233, %v886
        %v925 = vmul.f32 %v234, %v890
        %v926 = vmul.f32 %v235, %v894
        %v927 = vadd.f32 %v895, %v896
        %v928 = vadd.f32 %v927, %v897
        %v929 = vadd.f32 %v928, %v898
        %v930 = vadd.f32 %v929, %v899
        %v931 = vadd.f32 %v930, %v900
        %v932 = vadd.f32 %v931, %v901
        %v933 = vadd.f32 %v932, %v902
        %v934 = vadd.f32 %v903, %v904
        %v935 = vadd.f32 %v934, %v905
        %v936 = vadd.f32 %v935, %v906
        %v937 = vadd.f32 %v936, %v907
        %v938 = vadd.f32 %v937, %v908
        %v939 = vadd.f32 %v938, %v909
        %v940 = vadd.f32 %v939, %v910
        %v941 = vadd.f32 %v911, %v912
        %v942 = vadd.f32 %v941, %v913
        %v943 = vadd.f32 %v942, %v914
        %v944 = vadd.f32 %v943, %v915
        %v945 = vadd.f32 %v944, %v916
        %v946 = vadd.f32 %v945, %v917
        %v947 = vadd.f32 %v946, %v918
        %v948 = vadd.f32 %v919, %v920
        %v949 = vadd.f32 %v948, %v921
        %v950 = vadd.f32 %v949, %v922
        %v951 = vadd.f32 %v950, %v923
        %v952 = vadd.f32 %v951, %v924
        %v953 = vadd.f32 %v952, %v925
        %v954 = vadd.f32 %v953, %v926
        %v955 = vmul.f32 %v933, 1.442695
        %v956 = vpow.pop %v955
        %v957 = vmul.f32 %v940, 1.442695
        %v958 = vpow.pop %v957
        %v959 = vmul.f32 %v947, 1.442695
        %v960 = vpow.pop %v959
        %v961 = vmul.f32 %v954, 1.442695
        %v962 = vpow.pop %v961
        %v963 = vadd.f32 %v956, %v958
        %v964 = vadd.f32 %v963, %v960
        %v965 = vadd.f32 %v964, %v962
        %v966 = vrcp.pop %v965
        %v967 = vmul.f32 %v965, %v966
        %v968 = vsub.f32 2.0, %v967
        %v969 = vmul.f32 %v966, %v968
        %v970 = vmul.f32 %v956, %v969
        %v971 = vmul.f32 %v958, %v969
        %v972 = vmul.f32 %v960, %v969
        %v973 = vmul.f32 %v962, %v969
        %v974 = vmul.f32 %v204, %v970
        %v975 = vmul.f32 %v205, %v970
        %v976 = vmul.f32 %v206, %v970
        %v977 = vmul.f32 %v207, %v970
        %v978 = vmul.f32 %v208, %v970
        %v979 = vmul.f32 %v209, %v970
        %v980 = vmul.f32 %v210, %v970
        %v981 = vmul.f32 %v211, %v970
        %v982 = vmul.f32 %v212, %v971
        %v983 = vmul.f32 %v213, %v971
        %v984 = vmul.f32 %v214, %v971
        %v985 = vmul.f32 %v215, %v971
        %v986 = vmul.f32 %v216, %v971
        %v987 = vmul.f32 %v217, %v971
        %v988 = vmul.f32 %v218, %v971
        %v989 = vmul.f32 %v219, %v971
        %v990 = vmul.f32 %v220, %v972
        %v991 = vmul.f32 %v221, %v972
        %v992 = vmul.f32 %v222, %v972
        %v993 = vmul.f32 %v223, %v972
        %v994 = vmul.f32 %v224, %v972
        %v995 = vmul.f32 %v225, %v972
        %v996 = vmul.f32 %v226, %v972
        %v997 = vmul.f32 %v227, %v972
        %v998 = vmul.f32 %v228, %v973
        %v999 = vmul.f32 %v229, %v973
        %v1000 = vmul.f32 %v230, %v973
        %v1001 = vmul.f32 %v231, %v973
        %v1002 = vmul.f32 %v232, %v973
        %v1003 = vmul.f32 %v233, %v973
        %v1004 = vmul.f32 %v234, %v973
        %v1005 = vmul.f32 %v235, %v973
        %v1006 = vrot.slane %v974, 4
        %v1007 = vadd.f32 %v974, %v1006
        %v1008 = vrot.slane %v1007, 2
        %v1009 = vadd.f32 %v1007, %v1008
        %v1010 = vrot.slane %v1009, 1
        %v1011 = vadd.f32 %v1009, %v1010
        %v1012 = vrot.slane %v975, 4
        %v1013 = vadd.f32 %v975, %v1012
        %v1014 = vrot.slane %v1013, 2
        %v1015 = vadd.f32 %v1013, %v1014
        %v1016 = vrot.slane %v1015, 1
        %v1017 = vadd.f32 %v1015, %v1016
        %v1018 = vrot.slane %v976, 4
        %v1019 = vadd.f32 %v976, %v1018
        %v1020 = vrot.slane %v1019, 2
        %v1021 = vadd.f32 %v1019, %v1020
        %v1022 = vrot.slane %v1021, 1
        %v1023 = vadd.f32 %v1021, %v1022
        %v1024 = vrot.slane %v977, 4
        %v1025 = vadd.f32 %v977, %v1024
        %v1026 = vrot.slane %v1025, 2
        %v1027 = vadd.f32 %v1025, %v1026
        %v1028 = vrot.slane %v1027, 1
        %v1029 = vadd.f32 %v1027, %v1028
        %v1030 = vrot.slane %v978, 4
        %v1031 = vadd.f32 %v978, %v1030
        %v1032 = vrot.slane %v1031, 2
        %v1033 = vadd.f32 %v1031, %v1032
        %v1034 = vrot.slane %v1033, 1
        %v1035 = vadd.f32 %v1033, %v1034
        %v1036 = vrot.slane %v979, 4
        %v1037 = vadd.f32 %v979, %v1036
        %v1038 = vrot.slane %v1037, 2
        %v1039 = vadd.f32 %v1037, %v1038
        %v1040 = vrot.slane %v1039, 1
        %v1041 = vadd.f32 %v1039, %v1040
        %v1042 = vrot.slane %v980, 4
        %v1043 = vadd.f32 %v980, %v1042
        %v1044 = vrot.slane %v1043, 2
        %v1045 = vadd.f32 %v1043, %v1044
        %v1046 = vrot.slane %v1045, 1
        %v1047 = vadd.f32 %v1045, %v1046
        %v1048 = vrot.slane %v981, 4
        %v1049 = vadd.f32 %v981, %v1048
        %v1050 = vrot.slane %v1049, 2
        %v1051 = vadd.f32 %v1049, %v1050
        %v1052 = vrot.slane %v1051, 1
        %v1053 = vadd.f32 %v1051, %v1052
        %v1054 = vrot.slane %v982, 4
        %v1055 = vadd.f32 %v982, %v1054
        %v1056 = vrot.slane %v1055, 2
        %v1057 = vadd.f32 %v1055, %v1056
        %v1058 = vrot.slane %v1057, 1
        %v1059 = vadd.f32 %v1057, %v1058
        %v1060 = vrot.slane %v983, 4
        %v1061 = vadd.f32 %v983, %v1060
        %v1062 = vrot.slane %v1061, 2
        %v1063 = vadd.f32 %v1061, %v1062
        %v1064 = vrot.slane %v1063, 1
        %v1065 = vadd.f32 %v1063, %v1064
        %v1066 = vrot.slane %v984, 4
        %v1067 = vadd.f32 %v984, %v1066
        %v1068 = vrot.slane %v1067, 2
        %v1069 = vadd.f32 %v1067, %v1068
        %v1070 = vrot.slane %v1069, 1
        %v1071 = vadd.f32 %v1069, %v1070
        %v1072 = vrot.slane %v985, 4
        %v1073 = vadd.f32 %v985, %v1072
        %v1074 = vrot.slane %v1073, 2
        %v1075 = vadd.f32 %v1073, %v1074
        %v1076 = vrot.slane %v1075, 1
        %v1077 = vadd.f32 %v1075, %v1076
        %v1078 = vrot.slane %v986, 4
        %v1079 = vadd.f32 %v986, %v1078
        %v1080 = vrot.slane %v1079, 2
        %v1081 = vadd.f32 %v1079, %v1080
        %v1082 = vrot.slane %v1081, 1
        %v1083 = vadd.f32 %v1081, %v1082
        %v1084 = vrot.slane %v987, 4
        %v1085 = vadd.f32 %v987, %v1084
        %v1086 = vrot.slane %v1085, 2
        %v1087 = vadd.f32 %v1085, %v1086
        %v1088 = vrot.slane %v1087, 1
        %v1089 = vadd.f32 %v1087, %v1088
        %v1090 = vrot.slane %v988, 4
        %v1091 = vadd.f32 %v988, %v1090
        %v1092 = vrot.slane %v1091, 2
        %v1093 = vadd.f32 %v1091, %v1092
        %v1094 = vrot.slane %v1093, 1
        %v1095 = vadd.f32 %v1093, %v1094
        %v1096 = vrot.slane %v989, 4
        %v1097 = vadd.f32 %v989, %v1096
        %v1098 = vrot.slane %v1097, 2
        %v1099 = vadd.f32 %v1097, %v1098
        %v1100 = vrot.slane %v1099, 1
        %v1101 = vadd.f32 %v1099, %v1100
        %v1102 = vrot.slane %v990, 4
        %v1103 = vadd.f32 %v990, %v1102
        %v1104 = vrot.slane %v1103, 2
        %v1105 = vadd.f32 %v1103, %v1104
        %v1106 = vrot.slane %v1105, 1
        %v1107 = vadd.f32 %v1105, %v1106
        %v1108 = vrot.slane %v991, 4
        %v1109 = vadd.f32 %v991, %v1108
        %v1110 = vrot.slane %v1109, 2
        %v1111 = vadd.f32 %v1109, %v1110
        %v1112 = vrot.slane %v1111, 1
        %v1113 = vadd.f32 %v1111, %v1112
        %v1114 = vrot.slane %v992, 4
        %v1115 = vadd.f32 %v992, %v1114
        %v1116 = vrot.slane %v1115, 2
        %v1117 = vadd.f32 %v1115, %v1116
        %v1118 = vrot.slane %v1117, 1
        %v1119 = vadd.f32 %v1117, %v1118
        %v1120 = vrot.slane %v993, 4
        %v1121 = vadd.f32 %v993, %v1120
        %v1122 = vrot.slane %v1121, 2
        %v1123 = vadd.f32 %v1121, %v1122
        %v1124 = vrot.slane %v1123, 1
        %v1125 = vadd.f32 %v1123, %v1124
        %v1126 = vrot.slane %v994, 4
        %v1127 = vadd.f32 %v994, %v1126
        %v1128 = vrot.slane %v1127, 2
        %v1129 = vadd.f32 %v1127, %v1128
        %v1130 = vrot.slane %v1129, 1
        %v1131 = vadd.f32 %v1129, %v1130
        %v1132 = vrot.slane %v995, 4
        %v1133 = vadd.f32 %v995, %v1132
        %v1134 = vrot.slane %v1133, 2
        %v1135 = vadd.f32 %v1133, %v1134
        %v1136 = vrot.slane %v1135, 1
        %v1137 = vadd.f32 %v1135, %v1136
        %v1138 = vrot.slane %v996, 4
        %v1139 = vadd.f32 %v996, %v1138
        %v1140 = vrot.slane %v1139, 2
        %v1141 = vadd.f32 %v1139, %v1140
        %v1142 = vrot.slane %v1141, 1
        %v1143 = vadd.f32 %v1141, %v1142
        %v1144 = vrot.slane %v997, 4
        %v1145 = vadd.f32 %v997, %v1144
        %v1146 = vrot.slane %v1145, 2
        %v1147 = vadd.f32 %v1145, %v1146
        %v1148 = vrot.slane %v1147, 1
        %v1149 = vadd.f32 %v1147, %v1148
        %v1150 = vrot.slane %v998, 4
        %v1151 = vadd.f32 %v998, %v1150
        %v1152 = vrot.slane %v1151, 2
        %v1153 = vadd.f32 %v1151, %v1152
        %v1154 = vrot.slane %v1153, 1
        %v1155 = vadd.f32 %v1153, %v1154
        %v1156 = vrot.slane %v999, 4
        %v1157 = vadd.f32 %v999, %v1156
        %v1158 = vrot.slane %v1157, 2
        %v1159 = vadd.f32 %v1157, %v1158
        %v1160 = vrot.slane %v1159, 1
        %v1161 = vadd.f32 %v1159, %v1160
        %v1162 = vrot.slane %v1000, 4
        %v1163 = vadd.f32 %v1000, %v1162
        %v1164 = vrot.slane %v1163, 2
        %v1165 = vadd.f32 %v1163, %v1164
        %v1166 = vrot.slane %v1165, 1
        %v1167 = vadd.f32 %v1165, %v1166
        %v1168 = vrot.slane %v1001, 4
        %v1169 = vadd.f32 %v1001, %v1168
        %v1170 = vrot.slane %v1169, 2
        %v1171 = vadd.f32 %v1169, %v1170
        %v1172 = vrot.slane %v1171, 1
        %v1173 = vadd.f32 %v1171, %v1172
        %v1174 = vrot.slane %v1002, 4
        %v1175 = vadd.f32 %v1002, %v1174
        %v1176 = vrot.slane %v1175, 2
        %v1177 = vadd.f32 %v1175, %v1176
        %v1178 = vrot.slane %v1177, 1
        %v1179 = vadd.f32 %v1177, %v1178
        %v1180 = vrot.slane %v1003, 4
        %v1181 = vadd.f32 %v1003, %v1180
        %v1182 = vrot.slane %v1181, 2
        %v1183 = vadd.f32 %v1181, %v1182
        %v1184 = vrot.slane %v1183, 1
        %v1185 = vadd.f32 %v1183, %v1184
        %v1186 = vrot.slane %v1004, 4
        %v1187 = vadd.f32 %v1004, %v1186
        %v1188 = vrot.slane %v1187, 2
        %v1189 = vadd.f32 %v1187, %v1188
        %v1190 = vrot.slane %v1189, 1
        %v1191 = vadd.f32 %v1189, %v1190
        %v1192 = vrot.slane %v1005, 4
        %v1193 = vadd.f32 %v1005, %v1192
        %v1194 = vrot.slane %v1193, 2
        %v1195 = vadd.f32 %v1193, %v1194
        %v1196 = vrot.slane %v1195, 1
        %v1197 = vadd.f32 %v1195, %v1196
        %v1198 = vadd.f32 %v1011, %v200
        %v1199 = vadd.f32 %v1017, %v464
        %v1200 = vadd.f32 %v1023, %v465
        %v1201 = vadd.f32 %v1029, %v466
        %v1202 = vadd.f32 %v1035, %v467
        %v1203 = vadd.f32 %v1041, %v468
        %v1204 = vadd.f32 %v1047, %v469
        %v1205 = vadd.f32 %v1053, %v470
        %v1206 = vadd.f32 %v1059, %v201
        %v1207 = vadd.f32 %v1065, %v471
        %v1208 = vadd.f32 %v1071, %v472
        %v1209 = vadd.f32 %v1077, %v473
        %v1210 = vadd.f32 %v1083, %v474
        %v1211 = vadd.f32 %v1089, %v475
        %v1212 = vadd.f32 %v1095, %v476
        %v1213 = vadd.f32 %v1101, %v477
        %v1214 = vadd.f32 %v1107, %v202
        %v1215 = vadd.f32 %v1113, %v478
        %v1216 = vadd.f32 %v1119, %v479
        %v1217 = vadd.f32 %v1125, %v480
        %v1218 = vadd.f32 %v1131, %v481
        %v1219 = vadd.f32 %v1137, %v482
        %v1220 = vadd.f32 %v1143, %v483
        %v1221 = vadd.f32 %v1149, %v484
        %v1222 = vadd.f32 %v1155, %v203
        %v1223 = vadd.f32 %v1161, %v485
        %v1224 = vadd.f32 %v1167, %v486
        %v1225 = vadd.f32 %v1173, %v487
        %v1226 = vadd.f32 %v1179, %v488
        %v1227 = vadd.f32 %v1185, %v489
        %v1228 = vadd.f32 %v1191, %v490
        %v1229 = vadd.f32 %v1197, %v491
        %v1230 = vmul.f32 %v1198, %v1198
        %v1231 = vmul.f32 %v1199, %v1199
        %v1232 = vmul.f32 %v1200, %v1200
        %v1233 = vmul.f32 %v1201, %v1201
        %v1234 = vmul.f32 %v1202, %v1202
        %v1235 = vmul.f32 %v1203, %v1203
        %v1236 = vmul.f32 %v1204, %v1204
        %v1237 = vmul.f32 %v1205, %v1205
        %v1238 = vmul.f32 %v1206, %v1206
        %v1239 = vmul.f32 %v1207, %v1207
        %v1240 = vmul.f32 %v1208, %v1208
        %v1241 = vmul.f32 %v1209, %v1209
        %v1242 = vmul.f32 %v1210, %v1210
        %v1243 = vmul.f32 %v1211, %v1211
        %v1244 = vmul.f32 %v1212, %v1212
        %v1245 = vmul.f32 %v1213, %v1213
        %v1246 = vmul.f32 %v1214, %v1214
        %v1247 = vmul.f32 %v1215, %v1215
        %v1248 = vmul.f32 %v1216, %v1216
        %v1249 = vmul.f32 %v1217, %v1217
        %v1250 = vmul.f32 %v1218, %v1218
        %v1251 = vmul.f32 %v1219, %v1219
        %v1252 = vmul.f32 %v1220, %v1220
        %v1253 = vmul.f32 %v1221, %v1221
        %v1254 = vmul.f32 %v1222, %v1222
        %v1255 = vmul.f32 %v1223, %v1223
        %v1256 = vmul.f32 %v1224, %v1224
        %v1257 = vmul.f32 %v1225, %v1225
        %v1258 = vmul.f32 %v1226, %v1226
        %v1259 = vmul.f32 %v1227, %v1227
        %v1260 = vmul.f32 %v1228, %v1228
        %v1261 = vmul.f32 %v1229, %v1229
        %v1294 = vrot.slane %v1231, 7
        %v1295 = vsel %vm621, %v1294, %v1230
        %v1296 = vrot.slane %v1232, 6
        %v1297 = vsel %vm624, %v1296, %v1295
        %v1298 = vrot.slane %v1233, 5
        %v1299 = vsel %vm627, %v1298, %v1297
        %v1300 = vrot.slane %v1234, 4
        %v1301 = vsel %vm630, %v1300, %v1299
        %v1302 = vrot.slane %v1235, 3
        %v1303 = vsel %vm633, %v1302, %v1301
        %v1304 = vrot.slane %v1236, 2
        %v1305 = vsel %vm636, %v1304, %v1303
        %v1306 = vrot.slane %v1237, 1
        %v1307 = vsel %vm639, %v1306, %v1305
        %v1308 = vrot.slane %v1239, 7
        %v1309 = vsel %vm621, %v1308, %v1238
        %v1310 = vrot.slane %v1240, 6
        %v1311 = vsel %vm624, %v1310, %v1309
        %v1312 = vrot.slane %v1241, 5
        %v1313 = vsel %vm627, %v1312, %v1311
        %v1314 = vrot.slane %v1242, 4
        %v1315 = vsel %vm630, %v1314, %v1313
        %v1316 = vrot.slane %v1243, 3
        %v1317 = vsel %vm633, %v1316, %v1315
        %v1318 = vrot.slane %v1244, 2
        %v1319 = vsel %vm636, %v1318, %v1317
        %v1320 = vrot.slane %v1245, 1
        %v1321 = vsel %vm639, %v1320, %v1319
        %v1322 = vrot.slane %v1247, 7
        %v1323 = vsel %vm621, %v1322, %v1246
        %v1324 = vrot.slane %v1248, 6
        %v1325 = vsel %vm624, %v1324, %v1323
        %v1326 = vrot.slane %v1249, 5
        %v1327 = vsel %vm627, %v1326, %v1325
        %v1328 = vrot.slane %v1250, 4
        %v1329 = vsel %vm630, %v1328, %v1327
        %v1330 = vrot.slane %v1251, 3
        %v1331 = vsel %vm633, %v1330, %v1329
        %v1332 = vrot.slane %v1252, 2
        %v1333 = vsel %vm636, %v1332, %v1331
        %v1334 = vrot.slane %v1253, 1
        %v1335 = vsel %vm639, %v1334, %v1333
        %v1336 = vrot.slane %v1255, 7
        %v1337 = vsel %vm621, %v1336, %v1254
        %v1338 = vrot.slane %v1256, 6
        %v1339 = vsel %vm624, %v1338, %v1337
        %v1340 = vrot.slane %v1257, 5
        %v1341 = vsel %vm627, %v1340, %v1339
        %v1342 = vrot.slane %v1258, 4
        %v1343 = vsel %vm630, %v1342, %v1341
        %v1344 = vrot.slane %v1259, 3
        %v1345 = vsel %vm633, %v1344, %v1343
        %v1346 = vrot.slane %v1260, 2
        %v1347 = vsel %vm636, %v1346, %v1345
        %v1348 = vrot.slane %v1261, 1
        %v1349 = vsel %vm639, %v1348, %v1347
        %v1354 = vrot.slane %v1307, 4
        %v1355 = vadd.f32 %v1307, %v1354
        %v1356 = vrot.slane %v1355, 2
        %v1357 = vadd.f32 %v1355, %v1356
        %v1358 = vrot.slane %v1357, 1
        %v1359 = vadd.f32 %v1357, %v1358
        %v1360 = vrot.slane %v1321, 4
        %v1361 = vadd.f32 %v1321, %v1360
        %v1362 = vrot.slane %v1361, 2
        %v1363 = vadd.f32 %v1361, %v1362
        %v1364 = vrot.slane %v1363, 1
        %v1365 = vadd.f32 %v1363, %v1364
        %v1366 = vrot.slane %v1335, 4
        %v1367 = vadd.f32 %v1335, %v1366
        %v1368 = vrot.slane %v1367, 2
        %v1369 = vadd.f32 %v1367, %v1368
        %v1370 = vrot.slane %v1369, 1
        %v1371 = vadd.f32 %v1369, %v1370
        %v1372 = vrot.slane %v1349, 4
        %v1373 = vadd.f32 %v1349, %v1372
        %v1374 = vrot.slane %v1373, 2
        %v1375 = vadd.f32 %v1373, %v1374
        %v1376 = vrot.slane %v1375, 1
        %v1377 = vadd.f32 %v1375, %v1376
        %v1378 = vmax.f32 %v1359, 1e-24
        %v1379 = vmax.f32 %v1365, 1e-24
        %v1380 = vmax.f32 %v1371, 1e-24
        %v1381 = vmax.f32 %v1377, 1e-24
        %v1382 = vrsqrt.pop %v1378
        %v1383 = vrsqrt.pop %v1379
        %v1384 = vrsqrt.pop %v1380
        %v1385 = vrsqrt.pop %v1381
        %v1386 = vlaneseq
        %v1387 = vshrl.u32 %v1386, 7
        %v1388 = vsub.s32 0, %v1387
        %v1389 = vrot.slane %v1382, %v1388
        %v1390 = vlaneseq
        %v1391 = vshrl.u32 %v1390, 7
        %v1392 = vsub.s32 0, %v1391
        %v1393 = vrot.slane %v1383, %v1392
        %v1394 = vlaneseq
        %v1395 = vshrl.u32 %v1394, 7
        %v1396 = vsub.s32 0, %v1395
        %v1397 = vrot.slane %v1384, %v1396
        %v1398 = vlaneseq
        %v1399 = vshrl.u32 %v1398, 7
        %v1400 = vsub.s32 0, %v1399
        %v1401 = vrot.slane %v1385, %v1400
        %v1402 = vmul.f32 %v1198, %v1389
        %v1403 = vmul.f32 %v1199, %v1389
        %v1404 = vmul.f32 %v1200, %v1389
        %v1405 = vmul.f32 %v1201, %v1389
        %v1406 = vmul.f32 %v1202, %v1389
        %v1407 = vmul.f32 %v1203, %v1389
        %v1408 = vmul.f32 %v1204, %v1389
        %v1409 = vmul.f32 %v1205, %v1389
        %v1410 = vmul.f32 %v1206, %v1393
        %v1411 = vmul.f32 %v1207, %v1393
        %v1412 = vmul.f32 %v1208, %v1393
        %v1413 = vmul.f32 %v1209, %v1393
        %v1414 = vmul.f32 %v1210, %v1393
        %v1415 = vmul.f32 %v1211, %v1393
        %v1416 = vmul.f32 %v1212, %v1393
        %v1417 = vmul.f32 %v1213, %v1393
        %v1418 = vmul.f32 %v1214, %v1397
        %v1419 = vmul.f32 %v1215, %v1397
        %v1420 = vmul.f32 %v1216, %v1397
        %v1421 = vmul.f32 %v1217, %v1397
        %v1422 = vmul.f32 %v1218, %v1397
        %v1423 = vmul.f32 %v1219, %v1397
        %v1424 = vmul.f32 %v1220, %v1397
        %v1425 = vmul.f32 %v1221, %v1397
        %v1426 = vmul.f32 %v1222, %v1401
        %v1427 = vmul.f32 %v1223, %v1401
        %v1428 = vmul.f32 %v1224, %v1401
        %v1429 = vmul.f32 %v1225, %v1401
        %v1430 = vmul.f32 %v1226, %v1401
        %v1431 = vmul.f32 %v1227, %v1401
        %v1432 = vmul.f32 %v1228, %v1401
        %v1433 = vmul.f32 %v1229, %v1401
        %v1434 = vlaneseq
        %v1435 = vshrl.u32 %v1434, 7
        %v1436 = vsub.s32 0, %v1435
        %v1437 = vrot.slane %v1402, %v1436
        %v1438 = vlaneseq
        %v1439 = vshrl.u32 %v1438, 7
        %v1440 = vsub.s32 0, %v1439
        %v1441 = vrot.slane %v1403, %v1440
        %v1442 = vlaneseq
        %v1443 = vshrl.u32 %v1442, 7
        %v1444 = vsub.s32 0, %v1443
        %v1445 = vrot.slane %v1404, %v1444
        %v1446 = vlaneseq
        %v1447 = vshrl.u32 %v1446, 7
        %v1448 = vsub.s32 0, %v1447
        %v1449 = vrot.slane %v1405, %v1448
        %v1450 = vlaneseq
        %v1451 = vshrl.u32 %v1450, 7
        %v1452 = vsub.s32 0, %v1451
        %v1453 = vrot.slane %v1406, %v1452
        %v1454 = vlaneseq
        %v1455 = vshrl.u32 %v1454, 7
        %v1456 = vsub.s32 0, %v1455
        %v1457 = vrot.slane %v1407, %v1456
        %v1458 = vlaneseq
        %v1459 = vshrl.u32 %v1458, 7
        %v1460 = vsub.s32 0, %v1459
        %v1461 = vrot.slane %v1408, %v1460
        %v1462 = vlaneseq
        %v1463 = vshrl.u32 %v1462, 7
        %v1464 = vsub.s32 0, %v1463
        %v1465 = vrot.slane %v1409, %v1464
        %v1466 = vlaneseq
        %v1467 = vshrl.u32 %v1466, 7
        %v1468 = vsub.s32 0, %v1467
        %v1469 = vrot.slane %v1410, %v1468
        %v1470 = vlaneseq
        %v1471 = vshrl.u32 %v1470, 7
        %v1472 = vsub.s32 0, %v1471
        %v1473 = vrot.slane %v1411, %v1472
        %v1474 = vlaneseq
        %v1475 = vshrl.u32 %v1474, 7
        %v1476 = vsub.s32 0, %v1475
        %v1477 = vrot.slane %v1412, %v1476
        %v1478 = vlaneseq
        %v1479 = vshrl.u32 %v1478, 7
        %v1480 = vsub.s32 0, %v1479
        %v1481 = vrot.slane %v1413, %v1480
        %v1482 = vlaneseq
        %v1483 = vshrl.u32 %v1482, 7
        %v1484 = vsub.s32 0, %v1483
        %v1485 = vrot.slane %v1414, %v1484
        %v1486 = vlaneseq
        %v1487 = vshrl.u32 %v1486, 7
        %v1488 = vsub.s32 0, %v1487
        %v1489 = vrot.slane %v1415, %v1488
        %v1490 = vlaneseq
        %v1491 = vshrl.u32 %v1490, 7
        %v1492 = vsub.s32 0, %v1491
        %v1493 = vrot.slane %v1416, %v1492
        %v1494 = vlaneseq
        %v1495 = vshrl.u32 %v1494, 7
        %v1496 = vsub.s32 0, %v1495
        %v1497 = vrot.slane %v1417, %v1496
        %v1498 = vlaneseq
        %v1499 = vshrl.u32 %v1498, 7
        %v1500 = vsub.s32 0, %v1499
        %v1501 = vrot.slane %v1418, %v1500
        %v1502 = vlaneseq
        %v1503 = vshrl.u32 %v1502, 7
        %v1504 = vsub.s32 0, %v1503
        %v1505 = vrot.slane %v1419, %v1504
        %v1506 = vlaneseq
        %v1507 = vshrl.u32 %v1506, 7
        %v1508 = vsub.s32 0, %v1507
        %v1509 = vrot.slane %v1420, %v1508
        %v1510 = vlaneseq
        %v1511 = vshrl.u32 %v1510, 7
        %v1512 = vsub.s32 0, %v1511
        %v1513 = vrot.slane %v1421, %v1512
        %v1514 = vlaneseq
        %v1515 = vshrl.u32 %v1514, 7
        %v1516 = vsub.s32 0, %v1515
        %v1517 = vrot.slane %v1422, %v1516
        %v1518 = vlaneseq
        %v1519 = vshrl.u32 %v1518, 7
        %v1520 = vsub.s32 0, %v1519
        %v1521 = vrot.slane %v1423, %v1520
        %v1522 = vlaneseq
        %v1523 = vshrl.u32 %v1522, 7
        %v1524 = vsub.s32 0, %v1523
        %v1525 = vrot.slane %v1424, %v1524
        %v1526 = vlaneseq
        %v1527 = vshrl.u32 %v1526, 7
        %v1528 = vsub.s32 0, %v1527
        %v1529 = vrot.slane %v1425, %v1528
        %v1530 = vlaneseq
        %v1531 = vshrl.u32 %v1530, 7
        %v1532 = vsub.s32 0, %v1531
        %v1533 = vrot.slane %v1426, %v1532
        %v1534 = vlaneseq
        %v1535 = vshrl.u32 %v1534, 7
        %v1536 = vsub.s32 0, %v1535
        %v1537 = vrot.slane %v1427, %v1536
        %v1538 = vlaneseq
        %v1539 = vshrl.u32 %v1538, 7
        %v1540 = vsub.s32 0, %v1539
        %v1541 = vrot.slane %v1428, %v1540
        %v1542 = vlaneseq
        %v1543 = vshrl.u32 %v1542, 7
        %v1544 = vsub.s32 0, %v1543
        %v1545 = vrot.slane %v1429, %v1544
        %v1546 = vlaneseq
        %v1547 = vshrl.u32 %v1546, 7
        %v1548 = vsub.s32 0, %v1547
        %v1549 = vrot.slane %v1430, %v1548
        %v1550 = vlaneseq
        %v1551 = vshrl.u32 %v1550, 7
        %v1552 = vsub.s32 0, %v1551
        %v1553 = vrot.slane %v1431, %v1552
        %v1554 = vlaneseq
        %v1555 = vshrl.u32 %v1554, 7
        %v1556 = vsub.s32 0, %v1555
        %v1557 = vrot.slane %v1432, %v1556
        %v1558 = vlaneseq
        %v1559 = vshrl.u32 %v1558, 7
        %v1560 = vsub.s32 0, %v1559
        %v1561 = vrot.slane %v1433, %v1560
        %v1562 = vmul.f32 %v204, %v1437
        %v1563 = vmul.f32 %v205, %v1441
        %v1564 = vmul.f32 %v206, %v1445
        %v1565 = vmul.f32 %v207, %v1449
        %v1566 = vmul.f32 %v208, %v1453
        %v1567 = vmul.f32 %v209, %v1457
        %v1568 = vmul.f32 %v210, %v1461
        %v1569 = vmul.f32 %v211, %v1465
        %v1570 = vmul.f32 %v212, %v1469
        %v1571 = vmul.f32 %v213, %v1473
        %v1572 = vmul.f32 %v214, %v1477
        %v1573 = vmul.f32 %v215, %v1481
        %v1574 = vmul.f32 %v216, %v1485
        %v1575 = vmul.f32 %v217, %v1489
        %v1576 = vmul.f32 %v218, %v1493
        %v1577 = vmul.f32 %v219, %v1497
        %v1578 = vmul.f32 %v220, %v1501
        %v1579 = vmul.f32 %v221, %v1505
        %v1580 = vmul.f32 %v222, %v1509
        %v1581 = vmul.f32 %v223, %v1513
        %v1582 = vmul.f32 %v224, %v1517
        %v1583 = vmul.f32 %v225, %v1521
        %v1584 = vmul.f32 %v226, %v1525
        %v1585 = vmul.f32 %v227, %v1529
        %v1586 = vmul.f32 %v228, %v1533
        %v1587 = vmul.f32 %v229, %v1537
        %v1588 = vmul.f32 %v230, %v1541
        %v1589 = vmul.f32 %v231, %v1545
        %v1590 = vmul.f32 %v232, %v1549
        %v1591 = vmul.f32 %v233, %v1553
        %v1592 = vmul.f32 %v234, %v1557
        %v1593 = vmul.f32 %v235, %v1561
        %v1594 = vadd.f32 %v1562, %v1563
        %v1595 = vadd.f32 %v1594, %v1564
        %v1596 = vadd.f32 %v1595, %v1565
        %v1597 = vadd.f32 %v1596, %v1566
        %v1598 = vadd.f32 %v1597, %v1567
        %v1599 = vadd.f32 %v1598, %v1568
        %v1600 = vadd.f32 %v1599, %v1569
        %v1601 = vadd.f32 %v1570, %v1571
        %v1602 = vadd.f32 %v1601, %v1572
        %v1603 = vadd.f32 %v1602, %v1573
        %v1604 = vadd.f32 %v1603, %v1574
        %v1605 = vadd.f32 %v1604, %v1575
        %v1606 = vadd.f32 %v1605, %v1576
        %v1607 = vadd.f32 %v1606, %v1577
        %v1608 = vadd.f32 %v1578, %v1579
        %v1609 = vadd.f32 %v1608, %v1580
        %v1610 = vadd.f32 %v1609, %v1581
        %v1611 = vadd.f32 %v1610, %v1582
        %v1612 = vadd.f32 %v1611, %v1583
        %v1613 = vadd.f32 %v1612, %v1584
        %v1614 = vadd.f32 %v1613, %v1585
        %v1615 = vadd.f32 %v1586, %v1587
        %v1616 = vadd.f32 %v1615, %v1588
        %v1617 = vadd.f32 %v1616, %v1589
        %v1618 = vadd.f32 %v1617, %v1590
        %v1619 = vadd.f32 %v1618, %v1591
        %v1620 = vadd.f32 %v1619, %v1592
        %v1621 = vadd.f32 %v1620, %v1593
        %v1622 = vmul.f32 %v1600, 1.442695
        %v1623 = vpow.pop %v1622
        %v1624 = vmul.f32 %v1607, 1.442695
        %v1625 = vpow.pop %v1624
        %v1626 = vmul.f32 %v1614, 1.442695
        %v1627 = vpow.pop %v1626
        %v1628 = vmul.f32 %v1621, 1.442695
        %v1629 = vpow.pop %v1628
        %v1630 = vadd.f32 %v1623, %v1625
        %v1631 = vadd.f32 %v1630, %v1627
        %v1632 = vadd.f32 %v1631, %v1629
        %v1633 = vrcp.pop %v1632
        %v1634 = vmul.f32 %v1632, %v1633
        %v1635 = vsub.f32 2.0, %v1634
        %v1636 = vmul.f32 %v1633, %v1635
        %v1637 = vmul.f32 %v1623, %v1636
        %v1638 = vmul.f32 %v1625, %v1636
        %v1639 = vmul.f32 %v1627, %v1636
        %v1640 = vmul.f32 %v1629, %v1636
        %v1641 = vmul.f32 %v204, %v1637
        %v1642 = vmul.f32 %v205, %v1637
        %v1643 = vmul.f32 %v206, %v1637
        %v1644 = vmul.f32 %v207, %v1637
        %v1645 = vmul.f32 %v208, %v1637
        %v1646 = vmul.f32 %v209, %v1637
        %v1647 = vmul.f32 %v210, %v1637
        %v1648 = vmul.f32 %v211, %v1637
        %v1649 = vmul.f32 %v212, %v1638
        %v1650 = vmul.f32 %v213, %v1638
        %v1651 = vmul.f32 %v214, %v1638
        %v1652 = vmul.f32 %v215, %v1638
        %v1653 = vmul.f32 %v216, %v1638
        %v1654 = vmul.f32 %v217, %v1638
        %v1655 = vmul.f32 %v218, %v1638
        %v1656 = vmul.f32 %v219, %v1638
        %v1657 = vmul.f32 %v220, %v1639
        %v1658 = vmul.f32 %v221, %v1639
        %v1659 = vmul.f32 %v222, %v1639
        %v1660 = vmul.f32 %v223, %v1639
        %v1661 = vmul.f32 %v224, %v1639
        %v1662 = vmul.f32 %v225, %v1639
        %v1663 = vmul.f32 %v226, %v1639
        %v1664 = vmul.f32 %v227, %v1639
        %v1665 = vmul.f32 %v228, %v1640
        %v1666 = vmul.f32 %v229, %v1640
        %v1667 = vmul.f32 %v230, %v1640
        %v1668 = vmul.f32 %v231, %v1640
        %v1669 = vmul.f32 %v232, %v1640
        %v1670 = vmul.f32 %v233, %v1640
        %v1671 = vmul.f32 %v234, %v1640
        %v1672 = vmul.f32 %v235, %v1640
        %v1673 = vrot.slane %v1641, 4
        %v1674 = vadd.f32 %v1641, %v1673
        %v1675 = vrot.slane %v1674, 2
        %v1676 = vadd.f32 %v1674, %v1675
        %v1677 = vrot.slane %v1676, 1
        %v1678 = vadd.f32 %v1676, %v1677
        %v1679 = vrot.slane %v1642, 4
        %v1680 = vadd.f32 %v1642, %v1679
        %v1681 = vrot.slane %v1680, 2
        %v1682 = vadd.f32 %v1680, %v1681
        %v1683 = vrot.slane %v1682, 1
        %v1684 = vadd.f32 %v1682, %v1683
        %v1685 = vrot.slane %v1643, 4
        %v1686 = vadd.f32 %v1643, %v1685
        %v1687 = vrot.slane %v1686, 2
        %v1688 = vadd.f32 %v1686, %v1687
        %v1689 = vrot.slane %v1688, 1
        %v1690 = vadd.f32 %v1688, %v1689
        %v1691 = vrot.slane %v1644, 4
        %v1692 = vadd.f32 %v1644, %v1691
        %v1693 = vrot.slane %v1692, 2
        %v1694 = vadd.f32 %v1692, %v1693
        %v1695 = vrot.slane %v1694, 1
        %v1696 = vadd.f32 %v1694, %v1695
        %v1697 = vrot.slane %v1645, 4
        %v1698 = vadd.f32 %v1645, %v1697
        %v1699 = vrot.slane %v1698, 2
        %v1700 = vadd.f32 %v1698, %v1699
        %v1701 = vrot.slane %v1700, 1
        %v1702 = vadd.f32 %v1700, %v1701
        %v1703 = vrot.slane %v1646, 4
        %v1704 = vadd.f32 %v1646, %v1703
        %v1705 = vrot.slane %v1704, 2
        %v1706 = vadd.f32 %v1704, %v1705
        %v1707 = vrot.slane %v1706, 1
        %v1708 = vadd.f32 %v1706, %v1707
        %v1709 = vrot.slane %v1647, 4
        %v1710 = vadd.f32 %v1647, %v1709
        %v1711 = vrot.slane %v1710, 2
        %v1712 = vadd.f32 %v1710, %v1711
        %v1713 = vrot.slane %v1712, 1
        %v1714 = vadd.f32 %v1712, %v1713
        %v1715 = vrot.slane %v1648, 4
        %v1716 = vadd.f32 %v1648, %v1715
        %v1717 = vrot.slane %v1716, 2
        %v1718 = vadd.f32 %v1716, %v1717
        %v1719 = vrot.slane %v1718, 1
        %v1720 = vadd.f32 %v1718, %v1719
        %v1721 = vrot.slane %v1649, 4
        %v1722 = vadd.f32 %v1649, %v1721
        %v1723 = vrot.slane %v1722, 2
        %v1724 = vadd.f32 %v1722, %v1723
        %v1725 = vrot.slane %v1724, 1
        %v1726 = vadd.f32 %v1724, %v1725
        %v1727 = vrot.slane %v1650, 4
        %v1728 = vadd.f32 %v1650, %v1727
        %v1729 = vrot.slane %v1728, 2
        %v1730 = vadd.f32 %v1728, %v1729
        %v1731 = vrot.slane %v1730, 1
        %v1732 = vadd.f32 %v1730, %v1731
        %v1733 = vrot.slane %v1651, 4
        %v1734 = vadd.f32 %v1651, %v1733
        %v1735 = vrot.slane %v1734, 2
        %v1736 = vadd.f32 %v1734, %v1735
        %v1737 = vrot.slane %v1736, 1
        %v1738 = vadd.f32 %v1736, %v1737
        %v1739 = vrot.slane %v1652, 4
        %v1740 = vadd.f32 %v1652, %v1739
        %v1741 = vrot.slane %v1740, 2
        %v1742 = vadd.f32 %v1740, %v1741
        %v1743 = vrot.slane %v1742, 1
        %v1744 = vadd.f32 %v1742, %v1743
        %v1745 = vrot.slane %v1653, 4
        %v1746 = vadd.f32 %v1653, %v1745
        %v1747 = vrot.slane %v1746, 2
        %v1748 = vadd.f32 %v1746, %v1747
        %v1749 = vrot.slane %v1748, 1
        %v1750 = vadd.f32 %v1748, %v1749
        %v1751 = vrot.slane %v1654, 4
        %v1752 = vadd.f32 %v1654, %v1751
        %v1753 = vrot.slane %v1752, 2
        %v1754 = vadd.f32 %v1752, %v1753
        %v1755 = vrot.slane %v1754, 1
        %v1756 = vadd.f32 %v1754, %v1755
        %v1757 = vrot.slane %v1655, 4
        %v1758 = vadd.f32 %v1655, %v1757
        %v1759 = vrot.slane %v1758, 2
        %v1760 = vadd.f32 %v1758, %v1759
        %v1761 = vrot.slane %v1760, 1
        %v1762 = vadd.f32 %v1760, %v1761
        %v1763 = vrot.slane %v1656, 4
        %v1764 = vadd.f32 %v1656, %v1763
        %v1765 = vrot.slane %v1764, 2
        %v1766 = vadd.f32 %v1764, %v1765
        %v1767 = vrot.slane %v1766, 1
        %v1768 = vadd.f32 %v1766, %v1767
        %v1769 = vrot.slane %v1657, 4
        %v1770 = vadd.f32 %v1657, %v1769
        %v1771 = vrot.slane %v1770, 2
        %v1772 = vadd.f32 %v1770, %v1771
        %v1773 = vrot.slane %v1772, 1
        %v1774 = vadd.f32 %v1772, %v1773
        %v1775 = vrot.slane %v1658, 4
        %v1776 = vadd.f32 %v1658, %v1775
        %v1777 = vrot.slane %v1776, 2
        %v1778 = vadd.f32 %v1776, %v1777
        %v1779 = vrot.slane %v1778, 1
        %v1780 = vadd.f32 %v1778, %v1779
        %v1781 = vrot.slane %v1659, 4
        %v1782 = vadd.f32 %v1659, %v1781
        %v1783 = vrot.slane %v1782, 2
        %v1784 = vadd.f32 %v1782, %v1783
        %v1785 = vrot.slane %v1784, 1
        %v1786 = vadd.f32 %v1784, %v1785
        %v1787 = vrot.slane %v1660, 4
        %v1788 = vadd.f32 %v1660, %v1787
        %v1789 = vrot.slane %v1788, 2
        %v1790 = vadd.f32 %v1788, %v1789
        %v1791 = vrot.slane %v1790, 1
        %v1792 = vadd.f32 %v1790, %v1791
        %v1793 = vrot.slane %v1661, 4
        %v1794 = vadd.f32 %v1661, %v1793
        %v1795 = vrot.slane %v1794, 2
        %v1796 = vadd.f32 %v1794, %v1795
        %v1797 = vrot.slane %v1796, 1
        %v1798 = vadd.f32 %v1796, %v1797
        %v1799 = vrot.slane %v1662, 4
        %v1800 = vadd.f32 %v1662, %v1799
        %v1801 = vrot.slane %v1800, 2
        %v1802 = vadd.f32 %v1800, %v1801
        %v1803 = vrot.slane %v1802, 1
        %v1804 = vadd.f32 %v1802, %v1803
        %v1805 = vrot.slane %v1663, 4
        %v1806 = vadd.f32 %v1663, %v1805
        %v1807 = vrot.slane %v1806, 2
        %v1808 = vadd.f32 %v1806, %v1807
        %v1809 = vrot.slane %v1808, 1
        %v1810 = vadd.f32 %v1808, %v1809
        %v1811 = vrot.slane %v1664, 4
        %v1812 = vadd.f32 %v1664, %v1811
        %v1813 = vrot.slane %v1812, 2
        %v1814 = vadd.f32 %v1812, %v1813
        %v1815 = vrot.slane %v1814, 1
        %v1816 = vadd.f32 %v1814, %v1815
        %v1817 = vrot.slane %v1665, 4
        %v1818 = vadd.f32 %v1665, %v1817
        %v1819 = vrot.slane %v1818, 2
        %v1820 = vadd.f32 %v1818, %v1819
        %v1821 = vrot.slane %v1820, 1
        %v1822 = vadd.f32 %v1820, %v1821
        %v1823 = vrot.slane %v1666, 4
        %v1824 = vadd.f32 %v1666, %v1823
        %v1825 = vrot.slane %v1824, 2
        %v1826 = vadd.f32 %v1824, %v1825
        %v1827 = vrot.slane %v1826, 1
        %v1828 = vadd.f32 %v1826, %v1827
        %v1829 = vrot.slane %v1667, 4
        %v1830 = vadd.f32 %v1667, %v1829
        %v1831 = vrot.slane %v1830, 2
        %v1832 = vadd.f32 %v1830, %v1831
        %v1833 = vrot.slane %v1832, 1
        %v1834 = vadd.f32 %v1832, %v1833
        %v1835 = vrot.slane %v1668, 4
        %v1836 = vadd.f32 %v1668, %v1835
        %v1837 = vrot.slane %v1836, 2
        %v1838 = vadd.f32 %v1836, %v1837
        %v1839 = vrot.slane %v1838, 1
        %v1840 = vadd.f32 %v1838, %v1839
        %v1841 = vrot.slane %v1669, 4
        %v1842 = vadd.f32 %v1669, %v1841
        %v1843 = vrot.slane %v1842, 2
        %v1844 = vadd.f32 %v1842, %v1843
        %v1845 = vrot.slane %v1844, 1
        %v1846 = vadd.f32 %v1844, %v1845
        %v1847 = vrot.slane %v1670, 4
        %v1848 = vadd.f32 %v1670, %v1847
        %v1849 = vrot.slane %v1848, 2
        %v1850 = vadd.f32 %v1848, %v1849
        %v1851 = vrot.slane %v1850, 1
        %v1852 = vadd.f32 %v1850, %v1851
        %v1853 = vrot.slane %v1671, 4
        %v1854 = vadd.f32 %v1671, %v1853
        %v1855 = vrot.slane %v1854, 2
        %v1856 = vadd.f32 %v1854, %v1855
        %v1857 = vrot.slane %v1856, 1
        %v1858 = vadd.f32 %v1856, %v1857
        %v1859 = vrot.slane %v1672, 4
        %v1860 = vadd.f32 %v1672, %v1859
        %v1861 = vrot.slane %v1860, 2
        %v1862 = vadd.f32 %v1860, %v1861
        %v1863 = vrot.slane %v1862, 1
        %v1864 = vadd.f32 %v1862, %v1863
        %v1865 = vadd.f32 %v1678, %v200
        %v1866 = vadd.f32 %v1684, %v464
        %v1867 = vadd.f32 %v1690, %v465
        %v1868 = vadd.f32 %v1696, %v466
        %v1869 = vadd.f32 %v1702, %v467
        %v1870 = vadd.f32 %v1708, %v468
        %v1871 = vadd.f32 %v1714, %v469
        %v1872 = vadd.f32 %v1720, %v470
        %v1873 = vadd.f32 %v1726, %v201
        %v1874 = vadd.f32 %v1732, %v471
        %v1875 = vadd.f32 %v1738, %v472
        %v1876 = vadd.f32 %v1744, %v473
        %v1877 = vadd.f32 %v1750, %v474
        %v1878 = vadd.f32 %v1756, %v475
        %v1879 = vadd.f32 %v1762, %v476
        %v1880 = vadd.f32 %v1768, %v477
        %v1881 = vadd.f32 %v1774, %v202
        %v1882 = vadd.f32 %v1780, %v478
        %v1883 = vadd.f32 %v1786, %v479
        %v1884 = vadd.f32 %v1792, %v480
        %v1885 = vadd.f32 %v1798, %v481
        %v1886 = vadd.f32 %v1804, %v482
        %v1887 = vadd.f32 %v1810, %v483
        %v1888 = vadd.f32 %v1816, %v484
        %v1889 = vadd.f32 %v1822, %v203
        %v1890 = vadd.f32 %v1828, %v485
        %v1891 = vadd.f32 %v1834, %v486
        %v1892 = vadd.f32 %v1840, %v487
        %v1893 = vadd.f32 %v1846, %v488
        %v1894 = vadd.f32 %v1852, %v489
        %v1895 = vadd.f32 %v1858, %v490
        %v1896 = vadd.f32 %v1864, %v491
        %v1929 = vrot.slane %v1866, 7
        %v1930 = vsel %vm621, %v1929, %v1865
        %v1931 = vrot.slane %v1867, 6
        %v1932 = vsel %vm624, %v1931, %v1930
        %v1933 = vrot.slane %v1868, 5
        %v1934 = vsel %vm627, %v1933, %v1932
        %v1935 = vrot.slane %v1869, 4
        %v1936 = vsel %vm630, %v1935, %v1934
        %v1937 = vrot.slane %v1870, 3
        %v1938 = vsel %vm633, %v1937, %v1936
        %v1939 = vrot.slane %v1871, 2
        %v1940 = vsel %vm636, %v1939, %v1938
        %v1941 = vrot.slane %v1872, 1
        %v1942 = vsel %vm639, %v1941, %v1940
        %v1943 = vrot.slane %v1874, 7
        %v1944 = vsel %vm621, %v1943, %v1873
        %v1945 = vrot.slane %v1875, 6
        %v1946 = vsel %vm624, %v1945, %v1944
        %v1947 = vrot.slane %v1876, 5
        %v1948 = vsel %vm627, %v1947, %v1946
        %v1949 = vrot.slane %v1877, 4
        %v1950 = vsel %vm630, %v1949, %v1948
        %v1951 = vrot.slane %v1878, 3
        %v1952 = vsel %vm633, %v1951, %v1950
        %v1953 = vrot.slane %v1879, 2
        %v1954 = vsel %vm636, %v1953, %v1952
        %v1955 = vrot.slane %v1880, 1
        %v1956 = vsel %vm639, %v1955, %v1954
        %v1957 = vrot.slane %v1882, 7
        %v1958 = vsel %vm621, %v1957, %v1881
        %v1959 = vrot.slane %v1883, 6
        %v1960 = vsel %vm624, %v1959, %v1958
        %v1961 = vrot.slane %v1884, 5
        %v1962 = vsel %vm627, %v1961, %v1960
        %v1963 = vrot.slane %v1885, 4
        %v1964 = vsel %vm630, %v1963, %v1962
        %v1965 = vrot.slane %v1886, 3
        %v1966 = vsel %vm633, %v1965, %v1964
        %v1967 = vrot.slane %v1887, 2
        %v1968 = vsel %vm636, %v1967, %v1966
        %v1969 = vrot.slane %v1888, 1
        %v1970 = vsel %vm639, %v1969, %v1968
        %v1971 = vrot.slane %v1890, 7
        %v1972 = vsel %vm621, %v1971, %v1889
        %v1973 = vrot.slane %v1891, 6
        %v1974 = vsel %vm624, %v1973, %v1972
        %v1975 = vrot.slane %v1892, 5
        %v1976 = vsel %vm627, %v1975, %v1974
        %v1977 = vrot.slane %v1893, 4
        %v1978 = vsel %vm630, %v1977, %v1976
        %v1979 = vrot.slane %v1894, 3
        %v1980 = vsel %vm633, %v1979, %v1978
        %v1981 = vrot.slane %v1895, 2
        %v1982 = vsel %vm636, %v1981, %v1980
        %v1983 = vrot.slane %v1896, 1
        %v1984 = vsel %vm639, %v1983, %v1982
        %1989 = vst [vmem:[%s199] sm:$0xff] %v1942
        %1990 = vst [vmem:[%s199 + $0x8] sm:$0xff] %v1956
        %1991 = vst [vmem:[%s199 + $0x10] sm:$0xff] %v1970
        %1992 = vst [vmem:[%s199 + $0x18] sm:$0xff] %v1984
        %s1993 = sand.u32 %s82, 1
        %s1994 = scalar_lea.sflag [#allocation4], %s1993
        %s1995 = sand.u32 %s82, 1
        %s1996 = smul.addr %s1995, 32
        %s1997 = scalar_lea.vmem [#allocation7], %s1996
        // Predicated region
        $region37: #{tpu_custom_call.1} parent=27 // pred_check
          %p1998 = pneg %p92
        $region38: #{tpu_custom_call.1} parent=27 // pred_check_branch
          %2000 = sbr.rel (%p1998) target = $region40
        $region39: #{tpu_custom_call.1} parent=27 // pred_region
          %s2002 = ssub.s32 512, 512
          %2003 = vsyncadd %s1994, %s2002
          %s2004 = smul.addr %s22, 128
          %s2005 = scalar_lea.hbm %s2, %s2004
          %s2006 = sshll.u32 %s1997, 4
          %s2007 = int_to_ptr.vmem [resolvable:$true] %s2006
          %2012 = dma.vmem_to_hbm [thread:$0]  %s2007, 512, %s2005, %s1994, 128, 256, 8
        $region40: #{tpu_custom_call.1} parent=27 // pred_fallthru
          _
      $region28: #{tpu_custom_call.1} parent=5 // pred_fallthru
        _
      %p2013 = scmp.le.s32.totalorder 2, %s17
      // Predicated region
      $region41: #{tpu_custom_call.1} parent=5 // pred_check
        %p2014 = pneg %p2013
      $region42: #{tpu_custom_call.1} parent=5 // pred_check_branch
        %2016 = sbr.rel (%p2014) target = $region44
      $region43: #{tpu_custom_call.1} parent=5 // pred_region
        %s2017 = ssub.s32 %s17, 2
        // Predicated region
        $region45: #{tpu_custom_call.1} parent=43 // pred_check
          %p2018 = pneg %p98
        $region46: #{tpu_custom_call.1} parent=43 // pred_check_branch
          %2020 = sbr.rel (%p2018) target = $region48
        $region47: #{tpu_custom_call.1} parent=43 // pred_region
          %s2021 = sand.u32 %s83, 1
          %s2022 = scalar_lea.sflag [#allocation4], %s2021
          %s2023 = sand.u32 %s83, 1
          %s2024 = smul.addr %s2023, 32
          %s2025 = scalar_lea.vmem [#allocation7], %s2024
          %2026 = dma.done %s2022, 512
        $region48: #{tpu_custom_call.1} parent=43 // pred_fallthru
          _
      $region44: #{tpu_custom_call.1} parent=5 // pred_fallthru
        _
    $region6: #{tpu_custom_call.1} parent=1 // loop_footer
      %s21 = sadd.s32 1, %s17
    $region7: #{tpu_custom_call.1} parent=1 // loop_footer_branch
      %16 = sbr.rel target = $region3
    $region8: #{tpu_custom_call.1} parent=1 // loop_exit
      _
    %2027 = vsyncpa [#allocation3], 1
    %s2028 = scalar_lea.sflag [#allocation3], 1
    %2029 = vsyncpa %s2028, 1
    %2030 = vsyncpa [#allocation6], 1
    %s2031 = scalar_lea.sflag [#allocation6], 1
    %2032 = vsyncpa %s2031, 1
    %2033 = vsyncpa [#allocation4], 1
    %s2034 = scalar_lea.sflag [#allocation4], 1
    %2035 = vsyncpa %s2034, 1

</llo_original>
